<compile_context>
chip_gen: v6e
topology: v6e:2x2x1
jax: 0.10.0
libtpu: 0.0.40
codegen_flags: <defaults>
</compile_context>

<pallas_src>
import functools

import jax
import jax.numpy as jnp
from jax import lax
from jax.experimental import pallas as pl
from jax.experimental.pallas import tpu as pltpu

# module hyper-parameters (from USLLoss.__init__ defaults)
LAMBDA_EMB = 10.0
LAMBDA_C_REG = 1.0
LAMBDA_C_ALIGN = 1.0
LAMBDA_CYCLE = 1.0
LAMBDA_INTRI = 1.0
LAMBDA_REAL = 1.0
BASE_NUM = 48


def _round_up(x, m):
    return ((x + m - 1) // m) * m


def _usl_loss_kernel(rb_ref, fh_ref, lp_ref, cmat_ref, lat_ref, out_ref,
                     accg_ref, accd_ref, accs_ref,
                     svg_ref, svd_ref, svs_ref, *, f_cols):
    """Grid = (side, lpmtx_row_tile), both axes sequential ("arbitrary").

    Per step: one (TM, N) @ (N, B) Laplacian product and three small
    contractions accumulated over the row-tile (contraction) axis.  Side-0
    accumulators are snapshotted when side 1 starts; the last step assembles
    the scalar loss from both sides.
    """
    f32 = jnp.float32
    B = rb_ref.shape[1]
    FH = fh_ref.shape[1]
    TM = lp_ref.shape[0]
    F = f_cols
    H = FH - F

    s = pl.program_id(0)               # side: 0 -> "_1" tensors, 1 -> "_2"
    t = pl.program_id(1)               # lpmtx row tile
    n_tiles = pl.num_programs(1)
    last_side = pl.num_programs(0) - 1

    # -- snapshot side-0 accumulators at the side boundary (static indices) ---
    @pl.when(jnp.logical_and(s == 1, t == 0))
    def _save_side0():
        svg_ref[...] = accg_ref[...]
        svd_ref[...] = accd_ref[...]
        svs_ref[...] = accs_ref[...]

    # -- per-side accumulator init --------------------------------------------
    @pl.when(t == 0)
    def _init():
        accg_ref[...] = jnp.zeros_like(accg_ref)   # rebase.T @ rebase
        accd_ref[...] = jnp.zeros_like(accd_ref)   # rebase.T @ (lpmtx @ rebase)
        accs_ref[...] = jnp.zeros_like(accs_ref)   # rebase.T @ [fea | hand_fea]

    # -- this row tile's contribution -----------------------------------------
    row0 = pl.multiple_of(t * TM, 8)
    r_t = rb_ref[pl.ds(row0, TM), :]               # (TM, B)
    fh_t = fh_ref[pl.ds(row0, TM), :]              # (TM, FH)

    # the big, memory-bound product: (TM, N) @ (N, B)
    lr_t = jnp.dot(lp_ref[...], rb_ref[...], preferred_element_type=f32)

    def tdot(a, b):                                # a.T @ b (contract dim 0)
        return lax.dot_general(a, b, (((0,), (0,)), ((), ())),
                               preferred_element_type=f32)

    # Three small separate matmuls (no lane-misaligned fused concat).
    accg_ref[...] += tdot(r_t, r_t)
    accd_ref[...] += tdot(r_t.astype(f32), lr_t)
    accs_ref[...] += tdot(r_t, fh_t)

    # -- finalize: combine both sides into the scalar loss --------------------
    @pl.when(jnp.logical_and(s == last_side, t == n_tiles - 1))
    def _finalize():
        # every mean's 1/count folded into its lambda weight
        w_emb = LAMBDA_EMB / (B * B)
        w_reg = LAMBDA_C_REG / (B * B)
        w_aln = LAMBDA_C_ALIGN / (B * F)
        w_cyc = LAMBDA_CYCLE / (B * F)
        w_int = LAMBDA_INTRI / (B * F)
        w_real = LAMBDA_REAL / (B * H)

        g1, g2 = svg_ref[...], accg_ref[...]
        d1, d2 = svd_ref[...], accd_ref[...]
        sp1, sp2 = svs_ref[...], accs_ref[...]
        c1 = cmat_ref[pl.ds(0, B), :]
        c2 = cmat_ref[pl.ds(B, B), :]
        C21 = cmat_ref[pl.ds(2 * B, B), :]
        lat = lat_ref[...]                         # (B, F+H), zero cols >= F

        row = lax.broadcasted_iota(jnp.int32, (B, B), 0)
        col = lax.broadcasted_iota(jnp.int32, (B, B), 1)
        eye = (row == col).astype(f32)
        offd = 1.0 - eye

        def ndot(a, b):                            # a @ b.T (contract dim 1)
            return lax.dot_general(a, b, (((1,), (1,)), ((), ())),
                                   preferred_element_type=f32)

        dg1 = g1 - eye
        dg2 = g2 - eye
        cr1 = ndot(c1, c1) - eye
        cr2 = ndot(c2, c2) - eye
        # lambda_emb*(loss_ort + loss_diag) + lambda_C_reg*loss_C_reg
        acc_bb = (w_emb * (dg1 * dg1 + dg2 * dg2)
                  + w_emb * (jnp.abs(d1) + jnp.abs(d2)) * offd
                  + w_reg * (cr1 * cr1 + cr2 * cr2))               # (B, B)

        # column mask: cols < F are fea-spec columns, cols >= F hand-spec ones
        is_fea = lax.broadcasted_iota(jnp.int32, (B, FH), 1) < F

        m1 = jnp.dot(C21, sp1, preferred_element_type=f32)  # [:,F:] = C21@hand_spec_1
        m2 = jnp.dot(C21, sp2, preferred_element_type=f32)  # [:,:F] = C21@fea_spec_2
        p1 = jnp.dot(c1, sp1, preferred_element_type=f32)   # [:,:F] = c1@fea_spec_1
        p2 = jnp.dot(c2, sp2, preferred_element_type=f32)   # [:,:F] = c2@fea_spec_2

        d_map = jnp.where(is_fea, m2 - sp1, m1 - sp2)        # align | real diffs
        w_map = jnp.where(is_fea, jnp.float32(w_aln), jnp.float32(w_real))
        d_cy = p1 - p2
        di1 = p1 - lat
        di2 = p2 - lat
        acc_fh = (w_map * d_map * d_map
                  + jnp.where(is_fea,
                              w_cyc * d_cy * d_cy
                              + w_int * (di1 * di1 + di2 * di2),
                              0.0))                                # (B, F+H)

        # two same-shape reductions; no lane-misaligned concatenate
        out_ref[0, 0] = jnp.sum(acc_bb) + jnp.sum(acc_fh)


def usl_loss(rebase_1, rebase_2, fea_1, fea_2, c_1, c_2, C_21, latent_fea,
             lpmtx_1, lpmtx_2, hand_fea_1, hand_fea_2,
             *, use_bf16=False, max_rows_per_tile=512):
    """Scalar USL loss (is_syn=False path of USLLoss.forward)."""
    B = rebase_1.shape[1]
    F = fea_1.shape[1]
    H = hand_fea_1.shape[1]
    FH = F + H
    N1 = rebase_1.shape[0]
    N2 = rebase_2.shape[0]

    mm_dtype = jnp.bfloat16 if use_bf16 else jnp.float32
    isz = jnp.dtype(mm_dtype).itemsize

    # ---- row-tile selection for lpmtx ---------------------------------------
    # granule 16 keeps bf16 sublane packing aligned; cap one lp tile at ~12 MiB
    # so the double-buffered stream fits v7x's 64 MiB VMEM with headroom.
    g = 16
    n_g = _round_up(max(N1, N2, g), g)
    tile_cap = max(g, ((12 << 20) // max(n_g * isz, 1)) // g * g)
    tm_target = max(g, min(int(max_rows_per_tile), n_g, tile_cap))
    num_tiles = -(-n_g // tm_target)
    TM = _round_up(-(-n_g // num_tiles), g)
    N_pad = TM * num_tiles

    # ---- host-side packing / zero padding (exact: zero rows contribute 0) ---
    def pad_rows(x):
        return jnp.pad(x.astype(mm_dtype), ((0, N_pad - x.shape[0]), (0, 0)))

    def pad_sq(x):
        p = N_pad - x.shape[0]
        return jnp.pad(x.astype(mm_dtype), ((0, p), (0, p)))

    rb = jnp.stack([pad_rows(rebase_1), pad_rows(rebase_2)])            # (2,N,B)
    fh = jnp.stack([pad_rows(jnp.concatenate([fea_1, hand_fea_1], axis=1)),
                    pad_rows(jnp.concatenate([fea_2, hand_fea_2], axis=1))])
    lp = jnp.stack([pad_sq(lpmtx_1), pad_sq(lpmtx_2)])                  # (2,N,N)
    cmat = jnp.concatenate([c_1, c_2, C_21], axis=0).astype(jnp.float32)
    latp = jnp.pad(latent_fea.astype(jnp.float32), ((0, 0), (0, H)))    # (B,F+H)

    # ---- VMEM budget + cost hints -------------------------------------------
    lp_tile_bytes = TM * N_pad * isz
    big_bytes = 2 * lp_tile_bytes + 2 * N_pad * (B + FH) * isz
    small_bytes = 2 * (3 * B * B + B * FH) * 4 + 2 * (2 * B * B + B * FH) * 4
    vmem_limit = int(min(max((big_bytes + small_bytes) * 5 // 4 + (2 << 20),
                             32 << 20), 56 << 20))
    flops = (2 * 2 * N_pad * N_pad * B              # lpmtx @ rebase (2 sides)
             + 2 * 2 * N_pad * B * (2 * B + FH)     # spectral contractions
             + 2 * 6 * B * B * max(B, FH))          # finalize matmuls
    bytes_accessed = (2 * N_pad * N_pad * isz + 2 * N_pad * (B + FH) * isz
                      + (3 * B * B + B * FH) * 4 + 4)

    kernel = functools.partial(_usl_loss_kernel, f_cols=F)

    out = pl.pallas_call(
        kernel,
        out_shape=jax.ShapeDtypeStruct((1, 1), jnp.float32),
        grid=(2, num_tiles),
        in_specs=[
            pl.BlockSpec((None, N_pad, B), lambda s, t: (s, 0, 0)),   # rebase
            pl.BlockSpec((None, N_pad, FH), lambda s, t: (s, 0, 0)),  # [fea|hand]
            pl.BlockSpec((None, TM, N_pad), lambda s, t: (s, t, 0)),  # lpmtx rows
            pl.BlockSpec((3 * B, B), lambda s, t: (0, 0)),            # [c1;c2;C21]
            pl.BlockSpec((B, FH), lambda s, t: (0, 0)),               # latent (pad)
        ],
        out_specs=pl.BlockSpec(memory_space=pltpu.MemorySpace.SMEM),
        scratch_shapes=[
            pltpu.VMEM((B, B), jnp.float32),    # acc: gram
            pltpu.VMEM((B, B), jnp.float32),    # acc: diag
            pltpu.VMEM((B, FH), jnp.float32),   # acc: spec
            pltpu.VMEM((B, B), jnp.float32),    # saved side-0 gram
            pltpu.VMEM((B, B), jnp.float32),    # saved side-0 diag
            pltpu.VMEM((B, FH), jnp.float32),   # saved side-0 spec
        ],
        compiler_params=pltpu.CompilerParams(
            dimension_semantics=("arbitrary", "arbitrary"),
            vmem_limit_bytes=vmem_limit),
        cost_estimate=pl.CostEstimate(flops=flops, transcendentals=0,
                                      bytes_accessed=bytes_accessed),
    )(rb, fh, lp, cmat, latp)
    return out[0, 0]


def usl_loss_ref(rebase_1, rebase_2, fea_1, fea_2, c_1, c_2, C_21, latent_fea,
                 lpmtx_1, lpmtx_2, hand_fea_1, hand_fea_2):
    """Pure-JAX reference mirroring the PyTorch forward (is_syn=False)."""
    B = rebase_1.shape[1]
    eye = jnp.eye(B, dtype=jnp.float32)
    mse = lambda a, b: jnp.mean((a - b) ** 2)

    loss_ort = mse(eye, rebase_1.T @ rebase_1) + mse(eye, rebase_2.T @ rebase_2)
    d1 = (rebase_1.T @ (lpmtx_1 @ rebase_1)) * (1.0 - eye)
    d2 = (rebase_2.T @ (lpmtx_2 @ rebase_2)) * (1.0 - eye)
    loss_diag = jnp.mean(jnp.abs(d1)) + jnp.mean(jnp.abs(d2))
    loss_emb = loss_ort + loss_diag

    fs1 = rebase_1.T @ fea_1
    fs2 = rebase_2.T @ fea_2
    loss_C_align = mse(C_21 @ fs2, fs1)
    loss_C_reg = mse(eye, c_1 @ c_1.T) + mse(eye, c_2 @ c_2.T)
    loss_cycle = mse(c_1 @ fs1, c_2 @ fs2)
    loss_intri = mse(c_1 @ fs1, latent_fea) + mse(c_2 @ fs2, latent_fea)

    hs1 = rebase_1.T @ hand_fea_1
    hs2 = rebase_2.T @ hand_fea_2
    loss_real = mse(C_21 @ hs1, hs2)

    return (LAMBDA_EMB * loss_emb + LAMBDA_C_REG * loss_C_reg
            + LAMBDA_C_ALIGN * loss_C_align + LAMBDA_CYCLE * loss_cycle
            + LAMBDA_INTRI * loss_intri + LAMBDA_REAL * loss_real)


if __name__ == "__main__":
    key = jax.random.PRNGKey(0)
    B = BASE_NUM
    N1, N2, F, H = 100, 80, 32, 16          # unequal N + non-multiple-of-8 sizes
    ks = jax.random.split(key, 12)

    rebase_1 = jax.random.normal(ks[0], (N1, B), jnp.float32) * 0.1
    rebase_2 = jax.random.normal(ks[1], (N2, B), jnp.float32) * 0.1
    fea_1 = jax.random.normal(ks[2], (N1, F), jnp.float32)
    fea_2 = jax.random.normal(ks[3], (N2, F), jnp.float32)
    c_1 = jax.random.normal(ks[4], (B, B), jnp.float32) * 0.1
    c_2 = jax.random.normal(ks[5], (B, B), jnp.float32) * 0.1
    C_21 = jax.random.normal(ks[6], (B, B), jnp.float32) * 0.1
    latent_fea = jax.random.normal(ks[7], (B, F), jnp.float32)
    lpmtx_1 = jax.random.normal(ks[8], (N1, N1), jnp.float32)
    lpmtx_2 = jax.random.normal(ks[9], (N2, N2), jnp.float32)
    hand_fea_1 = jax.random.normal(ks[10], (N1, H), jnp.float32)
    hand_fea_2 = jax.random.normal(ks[11], (N2, H), jnp.float32)

    args = (rebase_1, rebase_2, fea_1, fea_2, c_1, c_2, C_21, latent_fea,
            lpmtx_1, lpmtx_2, hand_fea_1, hand_fea_2)

    loss_ref = jax.block_until_ready(usl_loss_ref(*args))
    assert jnp.isfinite(loss_ref), "non-finite reference loss"

    # 1) f32 path with a forced small row tile -> exercises the multi-tile grid
    #    and the cross-tile / cross-side accumulation.
    f32_fn = jax.jit(functools.partial(usl_loss, use_bf16=False,
                                       max_rows_per_tile=32))
    loss_f32 = jax.block_until_ready(f32_fn(*args))
    assert jnp.isfinite(loss_f32), "non-finite kernel loss (f32)"
    assert jnp.allclose(loss_f32, loss_ref, rtol=1e-4, atol=1e-4), (
        loss_f32, loss_ref)

    # 2) bf16 lpmtx/rebase/fea path (memory-bound operands at half the bytes).
    bf16_fn = jax.jit(functools.partial(usl_loss, use_bf16=True))
    loss_bf16 = jax.block_until_ready(bf16_fn(*args))
    assert jnp.isfinite(loss_bf16), "non-finite kernel loss (bf16)"
    assert jnp.allclose(loss_bf16, loss_ref, rtol=2e-2, atol=2e-2), (
        loss_bf16, loss_ref)

    print("KERNEL_OK")
</pallas_src>

<mosaic_0001>
module attributes {stable_mosaic.version = 11 : i64} {
  func.func @_usl_loss_kernel(%arg0: i32, %arg1: i32, %arg2: memref<1x128x48xf32, #tpu.memory_space<vmem>>, %arg3: memref<1x128x48xf32, #tpu.memory_space<vmem>>, %arg4: memref<1x32x128xf32, #tpu.memory_space<vmem>>, %arg5: memref<144x48xf32, #tpu.memory_space<vmem>>, %arg6: memref<48x48xf32, #tpu.memory_space<vmem>>, %arg7: memref<1x1xf32, #tpu.memory_space<smem>>, %arg8: memref<48x48xf32, #tpu.memory_space<vmem>>, %arg9: memref<48x48xf32, #tpu.memory_space<vmem>>, %arg10: memref<48x48xf32, #tpu.memory_space<vmem>>, %arg11: memref<48x48xf32, #tpu.memory_space<vmem>>, %arg12: memref<48x48xf32, #tpu.memory_space<vmem>>, %arg13: memref<48x48xf32, #tpu.memory_space<vmem>>) attributes {dimension_semantics = [#tpu.dimension_semantics<arbitrary>, #tpu.dimension_semantics<arbitrary>], iteration_bounds = array<i64: 2, 4>, scalar_prefetch = 0 : i64, scratch_operands = 6 : i64, tpu.core_type = #tpu.core_type<tc>, window_params = [{transform_indices = @transform_0, window_bounds = array<i64: 1, 128, 48>}, {transform_indices = @transform_1, window_bounds = array<i64: 1, 128, 48>}, {transform_indices = @transform_2, window_bounds = array<i64: 1, 32, 128>}, {pipeline_mode = #tpu.pipeline_mode<synchronous>, transform_indices = @transform_3, window_bounds = array<i64: 144, 48>}, {pipeline_mode = #tpu.pipeline_mode<synchronous>, transform_indices = @transform_4, window_bounds = array<i64: 48, 48>}, {transform_indices = @transform_5, window_bounds = array<i64: 1, 1>}]} {
    %c1_i32 = arith.constant 1 : i32
    %0 = arith.cmpi eq, %arg0, %c1_i32 : i32
    %c0_i32 = arith.constant 0 : i32
    %1 = arith.cmpi eq, %arg1, %c0_i32 : i32
    %2 = arith.andi %0, %1 : i1
    %3 = arith.extui %2 : i1 to i32
    %c0_i32_0 = arith.constant 0 : i32
    %4 = arith.cmpi ne, %3, %c0_i32_0 : i32
    scf.if %4 {
      %c0_29 = arith.constant 0 : index
      %c0_30 = arith.constant 0 : index
      %38 = vector.load %arg8[%c0_29, %c0_30] : memref<48x48xf32, #tpu.memory_space<vmem>>, vector<48x48xf32>
      %c0_31 = arith.constant 0 : index
      %c0_32 = arith.constant 0 : index
      %39 = vector.load %arg11[%c0_31, %c0_32] : memref<48x48xf32, #tpu.memory_space<vmem>>, vector<48x48xf32>
      tpu.vector_store %arg11[%c0_31, %c0_32], %38 {strides = array<i32>} : memref<48x48xf32, #tpu.memory_space<vmem>>, vector<48x48xf32>,
      %c0_33 = arith.constant 0 : index
      %c0_34 = arith.constant 0 : index
      %40 = vector.load %arg9[%c0_33, %c0_34] : memref<48x48xf32, #tpu.memory_space<vmem>>, vector<48x48xf32>
      %c0_35 = arith.constant 0 : index
      %c0_36 = arith.constant 0 : index
      %41 = vector.load %arg12[%c0_35, %c0_36] : memref<48x48xf32, #tpu.memory_space<vmem>>, vector<48x48xf32>
      tpu.vector_store %arg12[%c0_35, %c0_36], %40 {strides = array<i32>} : memref<48x48xf32, #tpu.memory_space<vmem>>, vector<48x48xf32>,
      %c0_37 = arith.constant 0 : index
      %c0_38 = arith.constant 0 : index
      %42 = vector.load %arg10[%c0_37, %c0_38] : memref<48x48xf32, #tpu.memory_space<vmem>>, vector<48x48xf32>
      %c0_39 = arith.constant 0 : index
      %c0_40 = arith.constant 0 : index
      %43 = vector.load %arg13[%c0_39, %c0_40] : memref<48x48xf32, #tpu.memory_space<vmem>>, vector<48x48xf32>
      tpu.vector_store %arg13[%c0_39, %c0_40], %42 {strides = array<i32>} : memref<48x48xf32, #tpu.memory_space<vmem>>, vector<48x48xf32>,
    } else {
    }
    %c0_i32_1 = arith.constant 0 : i32
    %5 = arith.cmpi eq, %arg1, %c0_i32_1 : i32
    %6 = arith.extui %5 : i1 to i32
    %c0_i32_2 = arith.constant 0 : i32
    %7 = arith.cmpi ne, %6, %c0_i32_2 : i32
    scf.if %7 {
      %cst_29 = arith.constant 0.000000e+00 : f32
      %38 = vector.broadcast %cst_29 : f32 to vector<48x48xf32>
      %c0_30 = arith.constant 0 : index
      %c0_31 = arith.constant 0 : index
      %39 = vector.load %arg8[%c0_30, %c0_31] : memref<48x48xf32, #tpu.memory_space<vmem>>, vector<48x48xf32>
      tpu.vector_store %arg8[%c0_30, %c0_31], %38 {strides = array<i32>} : memref<48x48xf32, #tpu.memory_space<vmem>>, vector<48x48xf32>,
      %cst_32 = arith.constant 0.000000e+00 : f32
      %40 = vector.broadcast %cst_32 : f32 to vector<48x48xf32>
      %c0_33 = arith.constant 0 : index
      %c0_34 = arith.constant 0 : index
      %41 = vector.load %arg9[%c0_33, %c0_34] : memref<48x48xf32, #tpu.memory_space<vmem>>, vector<48x48xf32>
      tpu.vector_store %arg9[%c0_33, %c0_34], %40 {strides = array<i32>} : memref<48x48xf32, #tpu.memory_space<vmem>>, vector<48x48xf32>,
      %cst_35 = arith.constant 0.000000e+00 : f32
      %42 = vector.broadcast %cst_35 : f32 to vector<48x48xf32>
      %c0_36 = arith.constant 0 : index
      %c0_37 = arith.constant 0 : index
      %43 = vector.load %arg10[%c0_36, %c0_37] : memref<48x48xf32, #tpu.memory_space<vmem>>, vector<48x48xf32>
      tpu.vector_store %arg10[%c0_36, %c0_37], %42 {strides = array<i32>} : memref<48x48xf32, #tpu.memory_space<vmem>>, vector<48x48xf32>,
    } else {
    }
    %c32_i32 = arith.constant 32 : i32
    %8 = arith.muli %arg1, %c32_i32 : i32
    %9 = tpu.assume_multiple %8, 8 : i32
    %c0 = arith.constant 0 : index
    %10 = arith.index_cast %9 : i32 to index
    %c0_3 = arith.constant 0 : index
    %11 = vector.load %arg2[%c0, %10, %c0_3] : memref<1x128x48xf32, #tpu.memory_space<vmem>>, vector<1x32x48xf32>
    %12 = vector.shape_cast %11 : vector<1x32x48xf32> to vector<32x48xf32>
    %c0_4 = arith.constant 0 : index
    %13 = arith.index_cast %9 : i32 to index
    %c0_5 = arith.constant 0 : index
    %14 = vector.load %arg3[%c0_4, %13, %c0_5] : memref<1x128x48xf32, #tpu.memory_space<vmem>>, vector<1x32x48xf32>
    %15 = vector.shape_cast %14 : vector<1x32x48xf32> to vector<32x48xf32>
    %c0_6 = arith.constant 0 : index
    %c0_7 = arith.constant 0 : index
    %c0_8 = arith.constant 0 : index
    %16 = vector.load %arg4[%c0_6, %c0_7, %c0_8] : memref<1x32x128xf32, #tpu.memory_space<vmem>>, vector<1x32x128xf32>
    %17 = vector.shape_cast %16 : vector<1x32x128xf32> to vector<32x128xf32>
    %c0_9 = arith.constant 0 : index
    %c0_10 = arith.constant 0 : index
    %c0_11 = arith.constant 0 : index
    %18 = vector.load %arg2[%c0_9, %c0_10, %c0_11] : memref<1x128x48xf32, #tpu.memory_space<vmem>>, vector<1x128x48xf32>
    %19 = vector.shape_cast %18 : vector<1x128x48xf32> to vector<128x48xf32>
    %cst = arith.constant dense<0.000000e+00> : vector<32x48xf32>
    %20 = tpu.matmul %17, %19, %cst {dimension_numbers = #tpu.dot_dimension_numbers<[1], [0], [0], [1], [0, 0, 1, 1], [], []>} : vector<32x128xf32>, vector<128x48xf32>, vector<32x48xf32> -> vector<32x48xf32>
    %c0_12 = arith.constant 0 : index
    %c0_13 = arith.constant 0 : index
    %21 = vector.load %arg8[%c0_12, %c0_13] : memref<48x48xf32, #tpu.memory_space<vmem>>, vector<48x48xf32>
    %cst_14 = arith.constant dense<0.000000e+00> : vector<48x48xf32>
    %22 = tpu.matmul %12, %12, %cst_14 {dimension_numbers = #tpu.dot_dimension_numbers<[0], [0], [1], [1], [0, 1, 1, 1], [], []>} : vector<32x48xf32>, vector<32x48xf32>, vector<48x48xf32> -> vector<48x48xf32>
    %23 = arith.addf %21, %22 : vector<48x48xf32>
    %c0_15 = arith.constant 0 : index
    %c0_16 = arith.constant 0 : index
    %24 = vector.load %arg8[%c0_15, %c0_16] : memref<48x48xf32, #tpu.memory_space<vmem>>, vector<48x48xf32>
    tpu.vector_store %arg8[%c0_15, %c0_16], %23 {strides = array<i32>} : memref<48x48xf32, #tpu.memory_space<vmem>>, vector<48x48xf32>,
    %c0_17 = arith.constant 0 : index
    %c0_18 = arith.constant 0 : index
    %25 = vector.load %arg9[%c0_17, %c0_18] : memref<48x48xf32, #tpu.memory_space<vmem>>, vector<48x48xf32>
    %cst_19 = arith.constant dense<0.000000e+00> : vector<48x48xf32>
    %26 = tpu.matmul %12, %20, %cst_19 {dimension_numbers = #tpu.dot_dimension_numbers<[0], [0], [1], [1], [0, 1, 1, 1], [], []>} : vector<32x48xf32>, vector<32x48xf32>, vector<48x48xf32> -> vector<48x48xf32>
    %27 = arith.addf %25, %26 : vector<48x48xf32>
    %c0_20 = arith.constant 0 : index
    %c0_21 = arith.constant 0 : index
    %28 = vector.load %arg9[%c0_20, %c0_21] : memref<48x48xf32, #tpu.memory_space<vmem>>, vector<48x48xf32>
    tpu.vector_store %arg9[%c0_20, %c0_21], %27 {strides = array<i32>} : memref<48x48xf32, #tpu.memory_space<vmem>>, vector<48x48xf32>,
    %c0_22 = arith.constant 0 : index
    %c0_23 = arith.constant 0 : index
    %29 = vector.load %arg10[%c0_22, %c0_23] : memref<48x48xf32, #tpu.memory_space<vmem>>, vector<48x48xf32>
    %cst_24 = arith.constant dense<0.000000e+00> : vector<48x48xf32>
    %30 = tpu.matmul %12, %15, %cst_24 {dimension_numbers = #tpu.dot_dimension_numbers<[0], [0], [1], [1], [0, 1, 1, 1], [], []>} : vector<32x48xf32>, vector<32x48xf32>, vector<48x48xf32> -> vector<48x48xf32>
    %31 = arith.addf %29, %30 : vector<48x48xf32>
    %c0_25 = arith.constant 0 : index
    %c0_26 = arith.constant 0 : index
    %32 = vector.load %arg10[%c0_25, %c0_26] : memref<48x48xf32, #tpu.memory_space<vmem>>, vector<48x48xf32>
    tpu.vector_store %arg10[%c0_25, %c0_26], %31 {strides = array<i32>} : memref<48x48xf32, #tpu.memory_space<vmem>>, vector<48x48xf32>,
    %c1_i32_27 = arith.constant 1 : i32
    %33 = arith.cmpi eq, %arg0, %c1_i32_27 : i32
    %c3_i32 = arith.constant 3 : i32
    %34 = arith.cmpi eq, %arg1, %c3_i32 : i32
    %35 = arith.andi %33, %34 : i1
    %36 = arith.extui %35 : i1 to i32
    %c0_i32_28 = arith.constant 0 : i32
    %37 = arith.cmpi ne, %36, %c0_i32_28 : i32
    scf.if %37 {
      %c0_29 = arith.constant 0 : index
      %c0_30 = arith.constant 0 : index
      %38 = vector.load %arg11[%c0_29, %c0_30] : memref<48x48xf32, #tpu.memory_space<vmem>>, vector<48x48xf32>
      %c0_31 = arith.constant 0 : index
      %c0_32 = arith.constant 0 : index
      %39 = vector.load %arg8[%c0_31, %c0_32] : memref<48x48xf32, #tpu.memory_space<vmem>>, vector<48x48xf32>
      %c0_33 = arith.constant 0 : index
      %c0_34 = arith.constant 0 : index
      %40 = vector.load %arg12[%c0_33, %c0_34] : memref<48x48xf32, #tpu.memory_space<vmem>>, vector<48x48xf32>
      %c0_35 = arith.constant 0 : index
      %c0_36 = arith.constant 0 : index
      %41 = vector.load %arg9[%c0_35, %c0_36] : memref<48x48xf32, #tpu.memory_space<vmem>>, vector<48x48xf32>
      %c0_37 = arith.constant 0 : index
      %c0_38 = arith.constant 0 : index
      %42 = vector.load %arg13[%c0_37, %c0_38] : memref<48x48xf32, #tpu.memory_space<vmem>>, vector<48x48xf32>
      %c0_39 = arith.constant 0 : index
      %c0_40 = arith.constant 0 : index
      %43 = vector.load %arg10[%c0_39, %c0_40] : memref<48x48xf32, #tpu.memory_space<vmem>>, vector<48x48xf32>
      %c0_41 = arith.constant 0 : index
      %c0_42 = arith.constant 0 : index
      %44 = vector.load %arg5[%c0_41, %c0_42] : memref<144x48xf32, #tpu.memory_space<vmem>>, vector<48x48xf32>
      %c48 = arith.constant 48 : index
      %c0_43 = arith.constant 0 : index
      %45 = vector.load %arg5[%c48, %c0_43] : memref<144x48xf32, #tpu.memory_space<vmem>>, vector<48x48xf32>
      %c96 = arith.constant 96 : index
      %c0_44 = arith.constant 0 : index
      %46 = vector.load %arg5[%c96, %c0_44] : memref<144x48xf32, #tpu.memory_space<vmem>>, vector<48x48xf32>
      %c0_45 = arith.constant 0 : index
      %c0_46 = arith.constant 0 : index
      %47 = vector.load %arg6[%c0_45, %c0_46] : memref<48x48xf32, #tpu.memory_space<vmem>>, vector<48x48xf32>
      %48 = tpu.iota {dimensions = array<i32: 0>} : vector<48x48xi32>
      %49 = tpu.iota {dimensions = array<i32: 1>} : vector<48x48xi32>
      %50 = arith.cmpi eq, %48, %49 : vector<48x48xi32>
      %51 = arith.extui %50 : vector<48x48xi1> to vector<48x48xi32>
      %52 = arith.sitofp %51 : vector<48x48xi32> to vector<48x48xf32>
      %cst_47 = arith.constant 1.000000e+00 : f32
      %53 = vector.broadcast %cst_47 : f32 to vector<48x48xf32>
      %54 = arith.subf %53, %52 : vector<48x48xf32>
      %55 = arith.subf %38, %52 : vector<48x48xf32>
      %56 = arith.subf %39, %52 : vector<48x48xf32>
      %cst_48 = arith.constant dense<0.000000e+00> : vector<48x48xf32>
      %57 = tpu.matmul %44, %44, %cst_48 {dimension_numbers = #tpu.dot_dimension_numbers<[1], [1], [0], [0], [0, 0, 1, 0], [], []>} : vector<48x48xf32>, vector<48x48xf32>, vector<48x48xf32> -> vector<48x48xf32>
      %58 = arith.subf %57, %52 : vector<48x48xf32>
      %cst_49 = arith.constant dense<0.000000e+00> : vector<48x48xf32>
      %59 = tpu.matmul %45, %45, %cst_49 {dimension_numbers = #tpu.dot_dimension_numbers<[1], [1], [0], [0], [0, 0, 1, 0], [], []>} : vector<48x48xf32>, vector<48x48xf32>, vector<48x48xf32> -> vector<48x48xf32>
      %60 = arith.subf %59, %52 : vector<48x48xf32>
      %61 = arith.mulf %55, %55 : vector<48x48xf32>
      %62 = arith.mulf %56, %56 : vector<48x48xf32>
      %63 = arith.addf %61, %62 : vector<48x48xf32>
      %cst_50 = arith.constant 0.00434027798 : f32
      %64 = vector.broadcast %cst_50 : f32 to vector<48x48xf32>
      %65 = arith.mulf %64, %63 : vector<48x48xf32>
      %66 = math.absf %40 : vector<48x48xf32>
      %67 = math.absf %41 : vector<48x48xf32>
      %68 = arith.addf %66, %67 : vector<48x48xf32>
      %cst_51 = arith.constant 0.00434027798 : f32
      %69 = vector.broadcast %cst_51 : f32 to vector<48x48xf32>
      %70 = arith.mulf %69, %68 : vector<48x48xf32>
      %71 = arith.mulf %70, %54 : vector<48x48xf32>
      %72 = arith.addf %65, %71 : vector<48x48xf32>
      %73 = arith.mulf %58, %58 : vector<48x48xf32>
      %74 = arith.mulf %60, %60 : vector<48x48xf32>
      %75 = arith.addf %73, %74 : vector<48x48xf32>
      %cst_52 = arith.constant 4.34027781E-4 : f32
      %76 = vector.broadcast %cst_52 : f32 to vector<48x48xf32>
      %77 = arith.mulf %76, %75 : vector<48x48xf32>
      %78 = arith.addf %72, %77 : vector<48x48xf32>
      %79 = tpu.iota {dimensions = array<i32: 1>} : vector<48x48xi32>
      %c32_i32_53 = arith.constant 32 : i32
      %80 = vector.broadcast %c32_i32_53 : i32 to vector<48x48xi32>
      %81 = arith.cmpi slt, %79, %80 : vector<48x48xi32>
      %cst_54 = arith.constant dense<0.000000e+00> : vector<48x48xf32>
      %82 = tpu.matmul %46, %42, %cst_54 {dimension_numbers = #tpu.dot_dimension_numbers<[1], [0], [0], [1], [0, 0, 1, 1], [], []>} : vector<48x48xf32>, vector<48x48xf32>, vector<48x48xf32> -> vector<48x48xf32>
      %cst_55 = arith.constant dense<0.000000e+00> : vector<48x48xf32>
      %83 = tpu.matmul %46, %43, %cst_55 {dimension_numbers = #tpu.dot_dimension_numbers<[1], [0], [0], [1], [0, 0, 1, 1], [], []>} : vector<48x48xf32>, vector<48x48xf32>, vector<48x48xf32> -> vector<48x48xf32>
      %cst_56 = arith.constant dense<0.000000e+00> : vector<48x48xf32>
      %84 = tpu.matmul %44, %42, %cst_56 {dimension_numbers = #tpu.dot_dimension_numbers<[1], [0], [0], [1], [0, 0, 1, 1], [], []>} : vector<48x48xf32>, vector<48x48xf32>, vector<48x48xf32> -> vector<48x48xf32>
      %cst_57 = arith.constant dense<0.000000e+00> : vector<48x48xf32>
      %85 = tpu.matmul %45, %43, %cst_57 {dimension_numbers = #tpu.dot_dimension_numbers<[1], [0], [0], [1], [0, 0, 1, 1], [], []>} : vector<48x48xf32>, vector<48x48xf32>, vector<48x48xf32> -> vector<48x48xf32>
      %86 = arith.subf %83, %42 : vector<48x48xf32>
      %87 = arith.subf %82, %43 : vector<48x48xf32>
      %88 = arith.select %81, %86, %87 : vector<48x48xi1>, vector<48x48xf32>
      %cst_58 = arith.constant 6.51041686E-4 : f32
      %cst_59 = arith.constant 0.00130208337 : f32
      %89 = vector.broadcast %cst_58 : f32 to vector<48x48xf32>
      %90 = vector.broadcast %cst_59 : f32 to vector<48x48xf32>
      %91 = arith.select %81, %89, %90 : vector<48x48xi1>, vector<48x48xf32>
      %92 = arith.subf %84, %85 : vector<48x48xf32>
      %93 = arith.subf %84, %47 : vector<48x48xf32>
      %94 = arith.subf %85, %47 : vector<48x48xf32>
      %95 = arith.mulf %91, %88 : vector<48x48xf32>
      %96 = arith.mulf %95, %88 : vector<48x48xf32>
      %cst_60 = arith.constant 6.51041686E-4 : f32
      %97 = vector.broadcast %cst_60 : f32 to vector<48x48xf32>
      %98 = arith.mulf %97, %92 : vector<48x48xf32>
      %99 = arith.mulf %98, %92 : vector<48x48xf32>
      %100 = arith.mulf %93, %93 : vector<48x48xf32>
      %101 = arith.mulf %94, %94 : vector<48x48xf32>
      %102 = arith.addf %100, %101 : vector<48x48xf32>
      %cst_61 = arith.constant 6.51041686E-4 : f32
      %103 = vector.broadcast %cst_61 : f32 to vector<48x48xf32>
      %104 = arith.mulf %103, %102 : vector<48x48xf32>
      %105 = arith.addf %99, %104 : vector<48x48xf32>
      %cst_62 = arith.constant 0.000000e+00 : f32
      %106 = vector.broadcast %cst_62 : f32 to vector<48x48xf32>
      %107 = arith.select %81, %105, %106 : vector<48x48xi1>, vector<48x48xf32>
      %108 = arith.addf %96, %107 : vector<48x48xf32>
      %109 = vector.shape_cast %78 : vector<48x48xf32> to vector<1x48x48xf32>
      %cst_63 = arith.constant dense<0.000000e+00> : vector<1xf32>
      %110 = vector.multi_reduction <add>, %109, %cst_63 [1, 2] : vector<1x48x48xf32> to vector<1xf32>
      %111 = vector.shape_cast %110 : vector<1xf32> to vector<1x1x1xf32>
      %112 = vector.extract %111[0, 0, 0] : f32 from vector<1x1x1xf32>
      %113 = vector.shape_cast %108 : vector<48x48xf32> to vector<1x48x48xf32>
      %cst_64 = arith.constant dense<0.000000e+00> : vector<1xf32>
      %114 = vector.multi_reduction <add>, %113, %cst_64 [1, 2] : vector<1x48x48xf32> to vector<1xf32>
      %115 = vector.shape_cast %114 : vector<1xf32> to vector<1x1x1xf32>
      %116 = vector.extract %115[0, 0, 0] : f32 from vector<1x1x1xf32>
      %117 = arith.addf %112, %116 : f32
      %c0_65 = arith.constant 0 : index
      %c0_66 = arith.constant 0 : index
      %118 = memref.load %arg7[%c0_65, %c0_66] : memref<1x1xf32, #tpu.memory_space<smem>>
      memref.store %117, %arg7[%c0_65, %c0_66] : memref<1x1xf32, #tpu.memory_space<smem>>
    } else {
    }
    return
  }
  func.func @transform_0(%arg0: i32, %arg1: i32) -> (i32, i32, i32) {
    %c0_i32 = arith.constant 0 : i32
    %c0_i32_0 = arith.constant 0 : i32
    %c0_i32_1 = arith.constant 0 : i32
    return %arg0, %c0_i32, %c0_i32_0 : i32, i32, i32
  }
  func.func @transform_1(%arg0: i32, %arg1: i32) -> (i32, i32, i32) {
    %c0_i32 = arith.constant 0 : i32
    %c0_i32_0 = arith.constant 0 : i32
    %c0_i32_1 = arith.constant 0 : i32
    return %arg0, %c0_i32, %c0_i32_0 : i32, i32, i32
  }
  func.func @transform_2(%arg0: i32, %arg1: i32) -> (i32, i32, i32) {
    %c0_i32 = arith.constant 0 : i32
    %c0_i32_0 = arith.constant 0 : i32
    return %arg0, %arg1, %c0_i32 : i32, i32, i32
  }
  func.func @transform_3(%arg0: i32, %arg1: i32) -> (i32, i32) {
    %c0_i32 = arith.constant 0 : i32
    %c0_i32_0 = arith.constant 0 : i32
    %c0_i32_1 = arith.constant 0 : i32
    return %c0_i32, %c0_i32_0 : i32, i32
  }
  func.func @transform_4(%arg0: i32, %arg1: i32) -> (i32, i32) {
    %c0_i32 = arith.constant 0 : i32
    %c0_i32_0 = arith.constant 0 : i32
    %c0_i32_1 = arith.constant 0 : i32
    return %c0_i32, %c0_i32_0 : i32, i32
  }
  func.func @transform_5(%arg0: i32, %arg1: i32) -> (i32, i32) {
    %c0_i32 = arith.constant 0 : i32
    %c0_i32_0 = arith.constant 0 : i32
    %c0_i32_1 = arith.constant 0 : i32
    return %c0_i32, %c0_i32_0 : i32, i32
  }
}

</mosaic_0001>

<llo_original>
// kernel: usl_loss.1
$region0: #{usl_loss.1}
  #allocation0 [shape = 'u32[]', space=smem, size = 0x4, offset = 0x4, fixed_abs, tag = 'smem constant byte address 0x4 - core index']
  #allocation1 [shape = 'u32[144,128]{1,0:T(1,128)}', space=vmem, size = 0x12000, scoped, tag = 'internal scratch']
  #allocation2 [shape = 'f32[48,48]{1,0:T(8,128)}', space=vmem, size = 0x6000, scoped, tag = 'scratch operand']
  #allocation3 [shape = 'f32[48,48]{1,0:T(8,128)}', space=vmem, size = 0x6000, scoped, tag = 'scratch operand']
  #allocation4 [shape = 'f32[48,48]{1,0:T(8,128)}', space=vmem, size = 0x6000, scoped, tag = 'scratch operand']
  #allocation5 [shape = 'f32[48,48]{1,0:T(8,128)}', space=vmem, size = 0x6000, scoped, tag = 'scratch operand']
  #allocation6 [shape = 'f32[48,48]{1,0:T(8,128)}', space=vmem, size = 0x6000, scoped, tag = 'scratch operand']
  #allocation7 [shape = 'f32[48,48]{1,0:T(8,128)}', space=vmem, size = 0x6000, scoped, tag = 'scratch operand']
  %s0 = inlined_call_operand.vmem [shape: f32[2,128,48], index: 0, kind: input, shape index: {}]
  %s1 = inlined_call_operand.vmem [shape: f32[2,128,48], index: 1, kind: input, shape index: {}]
  %s2 = inlined_call_operand.vmem [shape: f32[2,128,128], index: 2, kind: input, shape index: {}]
  %s3 = inlined_call_operand.vmem [shape: f32[144,48], index: 3, kind: input, shape index: {}]
  %s4 = inlined_call_operand.vmem [shape: f32[48,48], index: 4, kind: input, shape index: {}]
  %s5 = inlined_call_operand.hbm [shape: f32[1,1], index: 5, kind: output, shape index: {}]
  %s6 = sld [smem:[#allocation0]]
  $region65: #{usl_loss.1} parent=0
    _
  %s8 = ssub.s32 1, %s6
  %s9 = scalar_select 0, %s8, %s6
  $region1: #{usl_loss.1} parent=0
    #allocation8 [shape = 'u8[512]{0}', space=smem, size = 0x200, scoped, tag = 'output window, operand 0, single buffered']
    #allocation9 [shape = 's32[2]{0}', space=sflag, size = 0x8, scoped, tag = 'scoped memory for usl_loss.1']
    %10 = vsyncpa [#allocation9], 0
    loop: start=0, step=1, limit=10
    $region2: #{usl_loss.1} parent=1 // loop_pre_header
      _
    $region3: #{usl_loss.1} parent=1 // loop_header
      %s12 = sphi 0, %s16
      %p13 = scmp.ge.s32.totalorder %s12, 10
      %s19 = sphi 0, %s31
      %s20 = sphi 0, %s27
      %s21 = sphi 0, %s19
      %s22 = sphi 0, %s20
      %s23 = sphi 0, %s21
      %s24 = sphi 0, %s22
      %s34 = sphi 0, %s36
      %s37 = sphi 0, %s34
      %s38 = sphi 0, %s37
      %s54 = sphi 0, %s38
      %s60 = sphi 0, %s62
      %s63 = sphi 0, %s60
      %s64 = sphi 0, %s63
      %s80 = sphi 0, %s64
      %s88 = sphi 0, %s90
      %s91 = sphi 0, %s88
      %s92 = sphi 0, %s91
      %s108 = sphi 0, %s92
      %s112 = sphi 0, %s112
      %s114 = sphi 0, %s112
      %s115 = sphi 0, %s114
      %s129 = sphi 0, %s115
      %s133 = sphi 0, %s133
      %s135 = sphi 0, %s133
      %s136 = sphi 0, %s135
      %s150 = sphi 0, %s136
      %s154 = sphi 0, %s154
      %s156 = sphi 0, %s154
      %s157 = sphi 0, %s156
      %s171 = sphi 0, %s157
    $region4: #{usl_loss.1} parent=1 // loop_header_branch
      %15 = sbr.rel (%p13) target = $region8
    $region5: #{usl_loss.1} parent=1 // loop_body
      %s17 = ssub.s32 %s12, 1
      %s18 = ssub.s32 %s12, 2
      %s25 = sadd.s32 1, %s20
      %p26 = scmp.ge.s32.totalorder %s25, 4
      %s27 = scalar_select %p26, 0, %s25
      %s28 = sadd.s32 1, %s19
      %s29 = scalar_select %p26, %s28, %s19
      %p30 = scmp.ge.s32.totalorder %s29, 2
      %s31 = scalar_select %p30, 0, %s29
      %s32 = ssub.s32 %s19, %s31
      %p33 = scmp.eq.s32.totalorder %s32, 0
      %s35 = sadd.s32 %s34, 1
      %s36 = scalar_select %p33, %s34, %s35
      %p39 = pneg %p33
      %p40 = scmp.eq.s32.totalorder %s12, 7
      %p41 = por %p39, %p40
      %p42 = scmp.ne.s32.totalorder %s34, %s37
      %p43 = scmp.eq.s32.totalorder %s12, 0
      %p44 = por %p42, %p43
      %p45 = scmp.ne.s32.totalorder %s34, %s37
      %p46 = scmp.eq.s32.totalorder %s17, 7
      %p47 = por %p45, %p46
      %p48 = scmp.ne.s32.totalorder %s37, %s38
      %p49 = scmp.eq.s32.totalorder %s17, 0
      %p50 = por %p48, %p49
      %p51 = scmp.ne.s32.totalorder %s37, %s38
      %p52 = scmp.eq.s32.totalorder %s18, 7
      %p53 = por %p51, %p52
      %p55 = scmp.ne.s32.totalorder %s38, %s54
      %p56 = scmp.eq.s32.totalorder %s18, 0
      %p57 = por %p55, %p56
      %s58 = ssub.s32 %s19, %s31
      %p59 = scmp.eq.s32.totalorder %s58, 0
      %s61 = sadd.s32 %s60, 1
      %s62 = scalar_select %p59, %s60, %s61
      %p65 = pneg %p59
      %p66 = scmp.eq.s32.totalorder %s12, 7
      %p67 = por %p65, %p66
      %p68 = scmp.ne.s32.totalorder %s60, %s63
      %p69 = scmp.eq.s32.totalorder %s12, 0
      %p70 = por %p68, %p69
      %p71 = scmp.ne.s32.totalorder %s60, %s63
      %p72 = scmp.eq.s32.totalorder %s17, 7
      %p73 = por %p71, %p72
      %p74 = scmp.ne.s32.totalorder %s63, %s64
      %p75 = scmp.eq.s32.totalorder %s17, 0
      %p76 = por %p74, %p75
      %p77 = scmp.ne.s32.totalorder %s63, %s64
      %p78 = scmp.eq.s32.totalorder %s18, 7
      %p79 = por %p77, %p78
      %p81 = scmp.ne.s32.totalorder %s64, %s80
      %p82 = scmp.eq.s32.totalorder %s18, 0
      %p83 = por %p81, %p82
      %s84 = ssub.s32 %s19, %s31
      %s85 = ssub.s32 %s20, %s27
      %s86 = sor.u32 %s84, %s85
      %p87 = scmp.eq.s32.totalorder %s86, 0
      %s89 = sadd.s32 %s88, 1
      %s90 = scalar_select %p87, %s88, %s89
      %p93 = pneg %p87
      %p94 = scmp.eq.s32.totalorder %s12, 7
      %p95 = por %p93, %p94
      %p96 = scmp.ne.s32.totalorder %s88, %s91
      %p97 = scmp.eq.s32.totalorder %s12, 0
      %p98 = por %p96, %p97
      %p99 = scmp.ne.s32.totalorder %s88, %s91
      %p100 = scmp.eq.s32.totalorder %s17, 7
      %p101 = por %p99, %p100
      %p102 = scmp.ne.s32.totalorder %s91, %s92
      %p103 = scmp.eq.s32.totalorder %s17, 0
      %p104 = por %p102, %p103
      %p105 = scmp.ne.s32.totalorder %s91, %s92
      %p106 = scmp.eq.s32.totalorder %s18, 7
      %p107 = por %p105, %p106
      %p109 = scmp.ne.s32.totalorder %s92, %s108
      %p110 = scmp.eq.s32.totalorder %s18, 0
      %p111 = por %p109, %p110
      %s113 = sadd.s32 %s112, 1
      %p116 = scmp.eq.s32.totalorder %s12, 7
      %p117 = scmp.ne.s32.totalorder %s112, %s114
      %p118 = scmp.eq.s32.totalorder %s12, 0
      %p119 = por %p117, %p118
      %p120 = scmp.ne.s32.totalorder %s112, %s114
      %p121 = scmp.eq.s32.totalorder %s17, 7
      %p122 = por %p120, %p121
      %p123 = scmp.ne.s32.totalorder %s114, %s115
      %p124 = scmp.eq.s32.totalorder %s17, 0
      %p125 = por %p123, %p124
      %p126 = scmp.ne.s32.totalorder %s114, %s115
      %p127 = scmp.eq.s32.totalorder %s18, 7
      %p128 = por %p126, %p127
      %p130 = scmp.ne.s32.totalorder %s115, %s129
      %p131 = scmp.eq.s32.totalorder %s18, 0
      %p132 = por %p130, %p131
      %s134 = sadd.s32 %s133, 1
      %p137 = scmp.eq.s32.totalorder %s12, 7
      %p138 = scmp.ne.s32.totalorder %s133, %s135
      %p139 = scmp.eq.s32.totalorder %s12, 0
      %p140 = por %p138, %p139
      %p141 = scmp.ne.s32.totalorder %s133, %s135
      %p142 = scmp.eq.s32.totalorder %s17, 7
      %p143 = por %p141, %p142
      %p144 = scmp.ne.s32.totalorder %s135, %s136
      %p145 = scmp.eq.s32.totalorder %s17, 0
      %p146 = por %p144, %p145
      %p147 = scmp.ne.s32.totalorder %s135, %s136
      %p148 = scmp.eq.s32.totalorder %s18, 7
      %p149 = por %p147, %p148
      %p151 = scmp.ne.s32.totalorder %s136, %s150
      %p152 = scmp.eq.s32.totalorder %s18, 0
      %p153 = por %p151, %p152
      %s155 = sadd.s32 %s154, 1
      %p158 = scmp.eq.s32.totalorder %s12, 7
      %p159 = scmp.ne.s32.totalorder %s154, %s156
      %p160 = scmp.eq.s32.totalorder %s12, 0
      %p161 = por %p159, %p160
      %p162 = scmp.ne.s32.totalorder %s154, %s156
      %p163 = scmp.eq.s32.totalorder %s17, 7
      %p164 = por %p162, %p163
      %p165 = scmp.ne.s32.totalorder %s156, %s157
      %p166 = scmp.eq.s32.totalorder %s17, 0
      %p167 = por %p165, %p166
      %p168 = scmp.ne.s32.totalorder %s156, %s157
      %p169 = scmp.eq.s32.totalorder %s18, 7
      %p170 = por %p168, %p169
      %p172 = scmp.ne.s32.totalorder %s157, %s171
      %p173 = scmp.eq.s32.totalorder %s18, 0
      %p174 = por %p172, %p173
      %p175 = scmp.le.s32.totalorder 1, %s12
      %p176 = scmp.lt.s32.totalorder %s12, 9
      %p177 = pnand %p175, %p176
      %p178 = pneg %p177
      // Predicated region
      $region9: #{usl_loss.1} parent=5 // pred_check
        _
      $region10: #{usl_loss.1} parent=5 // pred_check_branch
        %180 = sbr.rel (%p177) target = $region12
      $region11: #{usl_loss.1} parent=5 // pred_region
        %s181 = ssub.s32 %s12, 1
        // Predicated region
        $region13: #{usl_loss.1} parent=11 // pred_check
          %p182 = pneg %p125
        $region14: #{usl_loss.1} parent=11 // pred_check_branch
          %184 = sbr.rel (%p182) target = $region16
        $region15: #{usl_loss.1} parent=11 // pred_region
          _
        $region16: #{usl_loss.1} parent=11 // pred_fallthru
          _
        // Predicated region
        $region17: #{usl_loss.1} parent=11 // pred_check
          %p185 = pneg %p146
        $region18: #{usl_loss.1} parent=11 // pred_check_branch
          %187 = sbr.rel (%p185) target = $region20
        $region19: #{usl_loss.1} parent=11 // pred_region
          _
        $region20: #{usl_loss.1} parent=11 // pred_fallthru
          _
      $region12: #{usl_loss.1} parent=5 // pred_fallthru
        _
      %p188 = scmp.lt.s32.totalorder %s12, 8
      // Predicated region
      $region21: #{usl_loss.1} parent=5 // pred_check
        %p189 = pneg %p188
      $region22: #{usl_loss.1} parent=5 // pred_check_branch
        %191 = sbr.rel (%p189) target = $region24
      $region23: #{usl_loss.1} parent=5 // pred_region
        // Predicated region
        $region25: #{usl_loss.1} parent=23 // pred_check
          %p192 = pneg %p44
        $region26: #{usl_loss.1} parent=23 // pred_check_branch
          %194 = sbr.rel (%p192) target = $region28
        $region27: #{usl_loss.1} parent=23 // pred_region
          %p195 = scmp.lt.s32.totalorder %s19, 1
          %s196 = scalar_select %p195, %s19, 1
          %s197 = smul.addr %s196, 16
          %s198 = smul.addr %s197, 8
          %s199 = scalar_lea.vmem %s0, %s198
        $region28: #{usl_loss.1} parent=23 // pred_fallthru
          _
        // Predicated region
        $region29: #{usl_loss.1} parent=23 // pred_check
          %p200 = pneg %p70
        $region30: #{usl_loss.1} parent=23 // pred_check_branch
          %202 = sbr.rel (%p200) target = $region32
        $region31: #{usl_loss.1} parent=23 // pred_region
          %p203 = scmp.lt.s32.totalorder %s19, 1
          %s204 = scalar_select %p203, %s19, 1
          %s205 = smul.addr %s204, 16
          %s206 = smul.addr %s205, 8
          %s207 = scalar_lea.vmem %s1, %s206
        $region32: #{usl_loss.1} parent=23 // pred_fallthru
          _
        // Predicated region
        $region33: #{usl_loss.1} parent=23 // pred_check
          %p208 = pneg %p98
        $region34: #{usl_loss.1} parent=23 // pred_check_branch
          %210 = sbr.rel (%p208) target = $region36
        $region35: #{usl_loss.1} parent=23 // pred_region
          %s211 = smul.u32 4, %s20
          %p212 = scmp.lt.s32.totalorder %s19, 1
          %s213 = scalar_select %p212, %s19, 1
          %p214 = scmp.lt.s32.totalorder %s211, 15
          %s215 = scalar_select %p214, %s211, 15
          %s216 = smul.addr %s213, 16
          %s217 = sadd.s32 %s215, %s216
          %s218 = smul.addr %s217, 8
          %s219 = scalar_lea.vmem %s2, %s218
          %s220 = smul.u32 4, %s20
        $region36: #{usl_loss.1} parent=23 // pred_fallthru
          _
      $region24: #{usl_loss.1} parent=5 // pred_fallthru
        _
      %p221 = scmp.le.s32.totalorder 1, %s12
      %p222 = scmp.lt.s32.totalorder %s12, 9
      %p223 = pnand %p221, %p222
      %p224 = pneg %p223
      // Predicated region
      $region37: #{usl_loss.1} parent=5 // pred_check
        _
      $region38: #{usl_loss.1} parent=5 // pred_check_branch
        %226 = sbr.rel (%p223) target = $region40
      $region39: #{usl_loss.1} parent=5 // pred_region
        %s227 = ssub.s32 %s12, 1
        %p228 = scmp.lt.s32.totalorder %s21, 1
        %s229 = scalar_select %p228, %s21, 1
        %s230 = smul.addr %s229, 16
        %s231 = smul.addr %s230, 8
        %s232 = scalar_lea.vmem %s0, %s231
        %p233 = pneg %p50
        %p234 = pneg %p47
        %p235 = scmp.lt.s32.totalorder %s21, 1
        %s236 = scalar_select %p235, %s21, 1
        %s237 = smul.addr %s236, 16
        %s238 = smul.addr %s237, 8
        %s239 = scalar_lea.vmem %s1, %s238
        %p240 = pneg %p76
        %p241 = pneg %p73
        %s242 = smul.u32 4, %s22
        %p243 = scmp.lt.s32.totalorder %s21, 1
        %s244 = scalar_select %p243, %s21, 1
        %p245 = scmp.lt.s32.totalorder %s242, 15
        %s246 = scalar_select %p245, %s242, 15
        %s247 = smul.addr %s244, 16
        %s248 = sadd.s32 %s246, %s247
        %s249 = smul.addr %s248, 8
        %s250 = scalar_lea.vmem %s2, %s249
        %p251 = pneg %p104
        %p252 = pneg %p101
        %p253 = pneg %p125
        %p254 = pneg %p122
        %p255 = pneg %p146
        %p256 = pneg %p143
        %p257 = pneg %p167
        %p258 = pneg %p164
        %p259 = scmp.lt.s32.totalorder %s21, 1
        %s260 = scalar_select %p259, %s21, 1
        %s261 = smul.addr %s260, 16
        %s262 = smul.addr %s261, 8
        %s263 = scalar_lea.vmem %s0, %s262
        %p264 = scmp.lt.s32.totalorder %s21, 1
        %s265 = scalar_select %p264, %s21, 1
        %s266 = smul.addr %s265, 16
        %s267 = smul.addr %s266, 8
        %s268 = scalar_lea.vmem %s1, %s267
        %s269 = smul.u32 4, %s22
        %p270 = scmp.lt.s32.totalorder %s21, 1
        %s271 = scalar_select %p270, %s21, 1
        %p272 = scmp.lt.s32.totalorder %s269, 15
        %s273 = scalar_select %p272, %s269, 15
        %s274 = smul.addr %s271, 16
        %s275 = sadd.s32 %s273, %s274
        %s276 = smul.addr %s275, 8
        %s277 = scalar_lea.vmem %s2, %s276
        %s278 = smul.u32 4, %s22
        %p279 = scmp.eq.s32.totalorder %s21, 1
        %p280 = scmp.eq.s32.totalorder %s22, 0
        %p281 = pnand %p279, %p280
        %p282 = pneg %p281
        // Predicated region
        $region41: #{usl_loss.1} parent=39 // pred_check
          _
        $region42: #{usl_loss.1} parent=39 // pred_check_branch
          %284 = sbr.rel (%p281) target = $region44
        $region43: #{usl_loss.1} parent=39 // pred_region
          %v285 = vld [vmem:[#allocation2] sm:$0xff]
          %v286 = vld [vmem:[#allocation2 + $0x8] sm:$0xff]
          %v287 = vld [vmem:[#allocation2 + $0x10] sm:$0xff]
          %v288 = vld [vmem:[#allocation2 + $0x18] sm:$0xff]
          %v289 = vld [vmem:[#allocation2 + $0x20] sm:$0xff]
          %v290 = vld [vmem:[#allocation2 + $0x28] sm:$0xff]
          %vm291 = vcmask 392192
          %292 = vst.msk [vmem:[#allocation5] sm:$0xff] %vm291, %v285
          %293 = vst.msk [vmem:[#allocation5 + $0x8] sm:$0xff] %vm291, %v286
          %294 = vst.msk [vmem:[#allocation5 + $0x10] sm:$0xff] %vm291, %v287
          %295 = vst.msk [vmem:[#allocation5 + $0x18] sm:$0xff] %vm291, %v288
          %296 = vst.msk [vmem:[#allocation5 + $0x20] sm:$0xff] %vm291, %v289
          %297 = vst.msk [vmem:[#allocation5 + $0x28] sm:$0xff] %vm291, %v290
          %v298 = vld [vmem:[#allocation3] sm:$0xff]
          %v299 = vld [vmem:[#allocation3 + $0x8] sm:$0xff]
          %v300 = vld [vmem:[#allocation3 + $0x10] sm:$0xff]
          %v301 = vld [vmem:[#allocation3 + $0x18] sm:$0xff]
          %v302 = vld [vmem:[#allocation3 + $0x20] sm:$0xff]
          %v303 = vld [vmem:[#allocation3 + $0x28] sm:$0xff]
          %304 = vst.msk [vmem:[#allocation6] sm:$0xff] %vm291, %v298
          %305 = vst.msk [vmem:[#allocation6 + $0x8] sm:$0xff] %vm291, %v299
          %306 = vst.msk [vmem:[#allocation6 + $0x10] sm:$0xff] %vm291, %v300
          %307 = vst.msk [vmem:[#allocation6 + $0x18] sm:$0xff] %vm291, %v301
          %308 = vst.msk [vmem:[#allocation6 + $0x20] sm:$0xff] %vm291, %v302
          %309 = vst.msk [vmem:[#allocation6 + $0x28] sm:$0xff] %vm291, %v303
          %v310 = vld [vmem:[#allocation4] sm:$0xff]
          %v311 = vld [vmem:[#allocation4 + $0x8] sm:$0xff]
          %v312 = vld [vmem:[#allocation4 + $0x10] sm:$0xff]
          %v313 = vld [vmem:[#allocation4 + $0x18] sm:$0xff]
          %v314 = vld [vmem:[#allocation4 + $0x20] sm:$0xff]
          %v315 = vld [vmem:[#allocation4 + $0x28] sm:$0xff]
          %316 = vst.msk [vmem:[#allocation7] sm:$0xff] %vm291, %v310
          %317 = vst.msk [vmem:[#allocation7 + $0x8] sm:$0xff] %vm291, %v311
          %318 = vst.msk [vmem:[#allocation7 + $0x10] sm:$0xff] %vm291, %v312
          %319 = vst.msk [vmem:[#allocation7 + $0x18] sm:$0xff] %vm291, %v313
          %320 = vst.msk [vmem:[#allocation7 + $0x20] sm:$0xff] %vm291, %v314
          %321 = vst.msk [vmem:[#allocation7 + $0x28] sm:$0xff] %vm291, %v315
        $region44: #{usl_loss.1} parent=39 // pred_fallthru
          _
        // Predicated region
        $region45: #{usl_loss.1} parent=39 // pred_check
          %p322 = pneg %p280
        $region46: #{usl_loss.1} parent=39 // pred_check_branch
          %324 = sbr.rel (%p322) target = $region48
        $region47: #{usl_loss.1} parent=39 // pred_region
          %vm325 = vcmask 392192
          %326 = vst.msk [vmem:[#allocation2] sm:$0xff] %vm325, 0.0
          %327 = vst.msk [vmem:[#allocation2 + $0x8] sm:$0xff] %vm325, 0.0
          %328 = vst.msk [vmem:[#allocation2 + $0x10] sm:$0xff] %vm325, 0.0
          %329 = vst.msk [vmem:[#allocation2 + $0x18] sm:$0xff] %vm325, 0.0
          %330 = vst.msk [vmem:[#allocation2 + $0x20] sm:$0xff] %vm325, 0.0
          %331 = vst.msk [vmem:[#allocation2 + $0x28] sm:$0xff] %vm325, 0.0
          %332 = vst.msk [vmem:[#allocation3] sm:$0xff] %vm325, 0.0
          %333 = vst.msk [vmem:[#allocation3 + $0x8] sm:$0xff] %vm325, 0.0
          %334 = vst.msk [vmem:[#allocation3 + $0x10] sm:$0xff] %vm325, 0.0
          %335 = vst.msk [vmem:[#allocation3 + $0x18] sm:$0xff] %vm325, 0.0
          %336 = vst.msk [vmem:[#allocation3 + $0x20] sm:$0xff] %vm325, 0.0
          %337 = vst.msk [vmem:[#allocation3 + $0x28] sm:$0xff] %vm325, 0.0
          %338 = vst.msk [vmem:[#allocation4] sm:$0xff] %vm325, 0.0
          %339 = vst.msk [vmem:[#allocation4 + $0x8] sm:$0xff] %vm325, 0.0
          %340 = vst.msk [vmem:[#allocation4 + $0x10] sm:$0xff] %vm325, 0.0
          %341 = vst.msk [vmem:[#allocation4 + $0x18] sm:$0xff] %vm325, 0.0
          %342 = vst.msk [vmem:[#allocation4 + $0x20] sm:$0xff] %vm325, 0.0
          %343 = vst.msk [vmem:[#allocation4 + $0x28] sm:$0xff] %vm325, 0.0
        $region48: #{usl_loss.1} parent=39 // pred_fallthru
          _
        %s344 = smul.u32 %s22, 32
        %s345 = scalar_lea.vmem %s263, %s344
        %v346 = vld [vmem:[%s345] sm:$0xff]
        %v347 = vld [vmem:[%s345 + $0x8] sm:$0xff]
        %v348 = vld [vmem:[%s345 + $0x10] sm:$0xff]
        %v349 = vld [vmem:[%s345 + $0x18] sm:$0xff]
        %s350 = scalar_lea.vmem %s268, %s344
        %v351 = vld [vmem:[%s350] sm:$0xff]
        %v352 = vld [vmem:[%s350 + $0x8] sm:$0xff]
        %v353 = vld [vmem:[%s350 + $0x10] sm:$0xff]
        %v354 = vld [vmem:[%s350 + $0x18] sm:$0xff]
        %v355 = vld [vmem:[%s277] sm:$0xff]
        %v356 = vld [vmem:[%s277 + $0x8] sm:$0xff]
        %v357 = vld [vmem:[%s277 + $0x10] sm:$0xff]
        %v358 = vld [vmem:[%s277 + $0x18] sm:$0xff]
        %v359 = vld [vmem:[%s263] sm:$0xff]
        %v360 = vld [vmem:[%s263 + $0x8] sm:$0xff]
        %v361 = vld [vmem:[%s263 + $0x10] sm:$0xff]
        %v362 = vld [vmem:[%s263 + $0x18] sm:$0xff]
        %v363 = vld [vmem:[%s263 + $0x20] sm:$0xff]
        %v364 = vld [vmem:[%s263 + $0x28] sm:$0xff]
        %v365 = vld [vmem:[%s263 + $0x30] sm:$0xff]
        %v366 = vld [vmem:[%s263 + $0x38] sm:$0xff]
        %v367 = vld [vmem:[%s263 + $0x40] sm:$0xff]
        %v368 = vld [vmem:[%s263 + $0x48] sm:$0xff]
        %v369 = vld [vmem:[%s263 + $0x50] sm:$0xff]
        %v370 = vld [vmem:[%s263 + $0x58] sm:$0xff]
        %v371 = vld [vmem:[%s263 + $0x60] sm:$0xff]
        %v372 = vld [vmem:[%s263 + $0x68] sm:$0xff]
        %v373 = vld [vmem:[%s263 + $0x70] sm:$0xff]
        %v374 = vld [vmem:[%s263 + $0x78] sm:$0xff]
        %375 = vmatprep.subr.mxu0 0.0
        %376 = vmatpush1.msra.mxu0 %v374
        %377 = vmatprep.subr.mxu0 0.0
        %378 = vmatpush1.msra.mxu0 %v373
        %379 = vmatprep.subr.mxu0 0.0
        %380 = vmatpush1.msra.mxu0 %v372
        %381 = vmatprep.subr.mxu0 0.0
        %382 = vmatpush1.msra.mxu0 %v371
        %383 = vmatprep.subr.mxu0 0.0
        %384 = vmatpush1.msra.mxu0 %v370
        %385 = vmatprep.subr.mxu0 0.0
        %386 = vmatpush1.msra.mxu0 %v369
        %387 = vmatprep.subr.mxu0 0.0
        %388 = vmatpush1.msra.mxu0 %v368
        %389 = vmatprep.subr.mxu0 0.0
        %390 = vmatpush1.msra.mxu0 %v367
        %391 = vmatprep.subr.mxu0 0.0
        %392 = vmatpush1.msra.mxu0 %v366
        %393 = vmatprep.subr.mxu0 0.0
        %394 = vmatpush1.msra.mxu0 %v365
        %395 = vmatprep.subr.mxu0 0.0
        %396 = vmatpush1.msra.mxu0 %v364
        %397 = vmatprep.subr.mxu0 0.0
        %398 = vmatpush1.msra.mxu0 %v363
        %399 = vmatprep.subr.mxu0 0.0
        %400 = vmatpush1.msra.mxu0 %v362
        %401 = vmatprep.subr.mxu0 0.0
        %402 = vmatpush1.msra.mxu0 %v361
        %403 = vmatprep.subr.mxu0 0.0
        %404 = vmatpush1.msra.mxu0 %v360
        %405 = vmatprep.subr.mxu0 0.0
        %406 = vmatpush1.msra.mxu0 %v359
        %407 = vmatprep.subr.mxu0 0.0
        %408 = vmatpush2.msra.mxu0 0.0
        %409 = vmatprep.subr.mxu0 0.0
        %410 = vmatpush2.msra.mxu0 0.0
        %411 = vmatprep.subr.mxu0 0.0
        %412 = vmatpush2.msra.mxu0 0.0
        %413 = vmatprep.subr.mxu0 0.0
        %414 = vmatpush2.msra.mxu0 0.0
        %415 = vmatprep.subr.mxu0 0.0
        %416 = vmatpush2.msra.mxu0 0.0
        %417 = vmatprep.subr.mxu0 0.0
        %418 = vmatpush2.msra.mxu0 0.0
        %419 = vmatprep.subr.mxu0 0.0
        %420 = vmatpush2.msra.mxu0 0.0
        %421 = vmatprep.subr.mxu0 0.0
        %422 = vmatpush2.msra.mxu0 0.0
        %423 = vmatprep.subr.mxu0 0.0
        %424 = vmatpush2.msra.mxu0 0.0
        %425 = vmatprep.subr.mxu0 0.0
        %426 = vmatpush2.msra.mxu0 0.0
        %427 = vmatprep.subr.mxu0 0.0
        %428 = vmatpush2.msra.mxu0 0.0
        %429 = vmatprep.subr.mxu0 0.0
        %430 = vmatpush2.msra.mxu0 0.0
        %431 = vmatprep.subr.mxu0 0.0
        %432 = vmatpush2.msra.mxu0 0.0
        %433 = vmatprep.subr.mxu0 0.0
        %434 = vmatpush2.msra.mxu0 0.0
        %435 = vmatprep.subr.mxu0 0.0
        %436 = vmatpush2.msra.mxu0 0.0
        %437 = vmatprep.subr.mxu0 0.0
        %438 = vmatpush2.msra.mxu0 0.0
        %439 = vmatprep.mubr.f32.mxu0 0.0
        %440 = vmatmul.mubr.f32.gmra.mxu0 %v355
        %v441 = vpop.f32.mrf.mxu0
        %v442 = vadd.f32 0.0, %v441
        %v443 = vpop.f32.mrf.mxu0
        %444 = vmatprep.mubr.f32.mxu0 0.0
        %445 = vmatmul.mubr.f32.gmra.mxu0 %v356
        %v446 = vpop.f32.mrf.mxu0
        %v447 = vadd.f32 0.0, %v446
        %v448 = vpop.f32.mrf.mxu0
        %449 = vmatprep.mubr.f32.mxu0 0.0
        %450 = vmatmul.mubr.f32.gmra.mxu0 %v357
        %v451 = vpop.f32.mrf.mxu0
        %v452 = vadd.f32 0.0, %v451
        %v453 = vpop.f32.mrf.mxu0
        %454 = vmatprep.mubr.f32.mxu0 0.0
        %455 = vmatmul.mubr.f32.gmra.mxu0 %v358
        %v456 = vpop.f32.mrf.mxu0
        %v457 = vadd.f32 0.0, %v456
        %v458 = vpop.f32.mrf.mxu0
        %459 = vdwg.mxu0
        %v460 = vld [vmem:[#allocation2] sm:$0xff]
        %v461 = vld [vmem:[#allocation2 + $0x8] sm:$0xff]
        %v462 = vld [vmem:[#allocation2 + $0x10] sm:$0xff]
        %v463 = vld [vmem:[#allocation2 + $0x18] sm:$0xff]
        %v464 = vld [vmem:[#allocation2 + $0x20] sm:$0xff]
        %v465 = vld [vmem:[#allocation2 + $0x28] sm:$0xff]
        %466 = vxpose.xlu0.b32.start [1/16] %v346, 128
        %467 = vxpose.xlu0.b32.cont [2/16] %v347, 128
        %468 = vxpose.xlu0.b32.cont [3/16] %v348, 128
        %469 = vxpose.xlu0.b32.cont [4/16] %v349, 128
        %470 = vxpose.xlu0.b32.cont [5/16] 0.0, 128
        %471 = vxpose.xlu0.b32.cont [6/16] 0.0, 128
        %472 = vxpose.xlu0.b32.cont [7/16] 0.0, 128
        %473 = vxpose.xlu0.b32.cont [8/16] 0.0, 128
        %474 = vxpose.xlu0.b32.cont [9/16] 0.0, 128
        %475 = vxpose.xlu0.b32.cont [10/16] 0.0, 128
        %476 = vxpose.xlu0.b32.cont [11/16] 0.0, 128
        %477 = vxpose.xlu0.b32.cont [12/16] 0.0, 128
        %478 = vxpose.xlu0.b32.cont [13/16] 0.0, 128
        %479 = vxpose.xlu0.b32.cont [14/16] 0.0, 128
        %480 = vxpose.xlu0.b32.cont [15/16] 0.0, 128
        %481 = vxpose.xlu0.b32.end [16/16] 0.0, 128
        %v482 = vpop.trf.xlu0
        %v483 = vpop.trf.xlu0
        %v484 = vpop.trf.xlu0
        %v485 = vpop.trf.xlu0
        %v486 = vpop.trf.xlu0
        %v487 = vpop.trf.xlu0
        %v488 = vpop.trf.xlu0
        %v489 = vpop.trf.xlu0
        %v490 = vpop.trf.xlu0
        %v491 = vpop.trf.xlu0
        %v492 = vpop.trf.xlu0
        %v493 = vpop.trf.xlu0
        %v494 = vpop.trf.xlu0
        %v495 = vpop.trf.xlu0
        %v496 = vpop.trf.xlu0
        %v497 = vpop.trf.xlu0
        %vm498 = vcmask 261120
        %v500 = vsel %vm498, %v482, 0
        %v503 = vsel %vm498, %v483, 0
        %v506 = vsel %vm498, %v484, 0
        %v509 = vsel %vm498, %v485, 0
        %v512 = vsel %vm498, %v486, 0
        %v515 = vsel %vm498, %v487, 0
        %517 = vmatprep.subr.mxu0 0.0
        %518 = vmatpush1.msra.mxu0 0.0
        %519 = vmatprep.subr.mxu0 0.0
        %520 = vmatpush1.msra.mxu0 0.0
        %521 = vmatprep.subr.mxu0 0.0
        %522 = vmatpush1.msra.mxu0 0.0
        %523 = vmatprep.subr.mxu0 0.0
        %524 = vmatpush1.msra.mxu0 0.0
        %525 = vmatprep.subr.mxu0 0.0
        %526 = vmatpush1.msra.mxu0 0.0
        %527 = vmatprep.subr.mxu0 0.0
        %528 = vmatpush1.msra.mxu0 0.0
        %529 = vmatprep.subr.mxu0 0.0
        %530 = vmatpush1.msra.mxu0 0.0
        %531 = vmatprep.subr.mxu0 0.0
        %532 = vmatpush1.msra.mxu0 0.0
        %533 = vmatprep.subr.mxu0 0.0
        %534 = vmatpush1.msra.mxu0 0.0
        %535 = vmatprep.subr.mxu0 0.0
        %536 = vmatpush1.msra.mxu0 0.0
        %537 = vmatprep.subr.mxu0 0.0
        %538 = vmatpush1.msra.mxu0 0.0
        %539 = vmatprep.subr.mxu0 0.0
        %540 = vmatpush1.msra.mxu0 0.0
        %541 = vmatprep.subr.mxu0 0.0
        %542 = vmatpush1.msra.mxu0 %v349
        %543 = vmatprep.subr.mxu0 0.0
        %544 = vmatpush1.msra.mxu0 %v348
        %545 = vmatprep.subr.mxu0 0.0
        %546 = vmatpush1.msra.mxu0 %v347
        %547 = vmatprep.subr.mxu0 0.0
        %548 = vmatpush1.msra.mxu0 %v346
        %549 = vmatprep.subr.mxu0 0.0
        %550 = vmatpush2.msra.mxu0 0.0
        %551 = vmatprep.subr.mxu0 0.0
        %552 = vmatpush2.msra.mxu0 0.0
        %553 = vmatprep.subr.mxu0 0.0
        %554 = vmatpush2.msra.mxu0 0.0
        %555 = vmatprep.subr.mxu0 0.0
        %556 = vmatpush2.msra.mxu0 0.0
        %557 = vmatprep.subr.mxu0 0.0
        %558 = vmatpush2.msra.mxu0 0.0
        %559 = vmatprep.subr.mxu0 0.0
        %560 = vmatpush2.msra.mxu0 0.0
        %561 = vmatprep.subr.mxu0 0.0
        %562 = vmatpush2.msra.mxu0 0.0
        %563 = vmatprep.subr.mxu0 0.0
        %564 = vmatpush2.msra.mxu0 0.0
        %565 = vmatprep.subr.mxu0 0.0
        %566 = vmatpush2.msra.mxu0 0.0
        %567 = vmatprep.subr.mxu0 0.0
        %568 = vmatpush2.msra.mxu0 0.0
        %569 = vmatprep.subr.mxu0 0.0
        %570 = vmatpush2.msra.mxu0 0.0
        %571 = vmatprep.subr.mxu0 0.0
        %572 = vmatpush2.msra.mxu0 0.0
        %573 = vmatprep.subr.mxu0 0.0
        %574 = vmatpush2.msra.mxu0 0.0
        %575 = vmatprep.subr.mxu0 0.0
        %576 = vmatpush2.msra.mxu0 0.0
        %577 = vmatprep.subr.mxu0 0.0
        %578 = vmatpush2.msra.mxu0 0.0
        %579 = vmatprep.subr.mxu0 0.0
        %580 = vmatpush2.msra.mxu0 0.0
        %581 = vmatprep.mubr.f32.mxu0 0.0
        %582 = vmatmul.mubr.f32.gmra.mxu0 %v500
        %v583 = vpop.f32.mrf.mxu0
        %v584 = vadd.f32 0.0, %v583
        %v585 = vpop.f32.mrf.mxu0
        %586 = vmatprep.mubr.f32.mxu0 0.0
        %587 = vmatmul.mubr.f32.gmra.mxu0 %v503
        %v588 = vpop.f32.mrf.mxu0
        %v589 = vadd.f32 0.0, %v588
        %v590 = vpop.f32.mrf.mxu0
        %591 = vmatprep.mubr.f32.mxu0 0.0
        %592 = vmatmul.mubr.f32.gmra.mxu0 %v506
        %v593 = vpop.f32.mrf.mxu0
        %v594 = vadd.f32 0.0, %v593
        %v595 = vpop.f32.mrf.mxu0
        %596 = vmatprep.mubr.f32.mxu0 0.0
        %597 = vmatmul.mubr.f32.gmra.mxu0 %v509
        %v598 = vpop.f32.mrf.mxu0
        %v599 = vadd.f32 0.0, %v598
        %v600 = vpop.f32.mrf.mxu0
        %601 = vmatprep.mubr.f32.mxu0 0.0
        %602 = vmatmul.mubr.f32.gmra.mxu0 %v512
        %v603 = vpop.f32.mrf.mxu0
        %v604 = vadd.f32 0.0, %v603
        %v605 = vpop.f32.mrf.mxu0
        %606 = vmatprep.mubr.f32.mxu0 0.0
        %607 = vmatmul.mubr.f32.gmra.mxu0 %v515
        %v608 = vpop.f32.mrf.mxu0
        %v609 = vadd.f32 0.0, %v608
        %v610 = vpop.f32.mrf.mxu0
        %611 = vdwg.mxu0
        %v612 = vadd.f32 %v460, %v584
        %v613 = vadd.f32 %v461, %v589
        %v614 = vadd.f32 %v462, %v594
        %v615 = vadd.f32 %v463, %v599
        %v616 = vadd.f32 %v464, %v604
        %v617 = vadd.f32 %v465, %v609
        %vm618 = vcmask 392192
        %619 = vst.msk [vmem:[#allocation2] sm:$0xff] %vm618, %v612
        %620 = vst.msk [vmem:[#allocation2 + $0x8] sm:$0xff] %vm618, %v613
        %621 = vst.msk [vmem:[#allocation2 + $0x10] sm:$0xff] %vm618, %v614
        %622 = vst.msk [vmem:[#allocation2 + $0x18] sm:$0xff] %vm618, %v615
        %623 = vst.msk [vmem:[#allocation2 + $0x20] sm:$0xff] %vm618, %v616
        %624 = vst.msk [vmem:[#allocation2 + $0x28] sm:$0xff] %vm618, %v617
        %v625 = vld [vmem:[#allocation3] sm:$0xff]
        %v626 = vld [vmem:[#allocation3 + $0x8] sm:$0xff]
        %v627 = vld [vmem:[#allocation3 + $0x10] sm:$0xff]
        %v628 = vld [vmem:[#allocation3 + $0x18] sm:$0xff]
        %v629 = vld [vmem:[#allocation3 + $0x20] sm:$0xff]
        %v630 = vld [vmem:[#allocation3 + $0x28] sm:$0xff]
        %631 = vmatprep.subr.mxu0 0.0
        %632 = vmatpush1.msra.mxu0 0.0
        %633 = vmatprep.subr.mxu0 0.0
        %634 = vmatpush1.msra.mxu0 0.0
        %635 = vmatprep.subr.mxu0 0.0
        %636 = vmatpush1.msra.mxu0 0.0
        %637 = vmatprep.subr.mxu0 0.0
        %638 = vmatpush1.msra.mxu0 0.0
        %639 = vmatprep.subr.mxu0 0.0
        %640 = vmatpush1.msra.mxu0 0.0
        %641 = vmatprep.subr.mxu0 0.0
        %642 = vmatpush1.msra.mxu0 0.0
        %643 = vmatprep.subr.mxu0 0.0
        %644 = vmatpush1.msra.mxu0 0.0
        %645 = vmatprep.subr.mxu0 0.0
        %646 = vmatpush1.msra.mxu0 0.0
        %647 = vmatprep.subr.mxu0 0.0
        %648 = vmatpush1.msra.mxu0 0.0
        %649 = vmatprep.subr.mxu0 0.0
        %650 = vmatpush1.msra.mxu0 0.0
        %651 = vmatprep.subr.mxu0 0.0
        %652 = vmatpush1.msra.mxu0 0.0
        %653 = vmatprep.subr.mxu0 0.0
        %654 = vmatpush1.msra.mxu0 0.0
        %655 = vmatprep.subr.mxu0 0.0
        %656 = vmatpush1.msra.mxu0 %v457
        %657 = vmatprep.subr.mxu0 0.0
        %658 = vmatpush1.msra.mxu0 %v452
        %659 = vmatprep.subr.mxu0 0.0
        %660 = vmatpush1.msra.mxu0 %v447
        %661 = vmatprep.subr.mxu0 0.0
        %662 = vmatpush1.msra.mxu0 %v442
        %663 = vmatprep.subr.mxu0 0.0
        %664 = vmatpush2.msra.mxu0 0.0
        %665 = vmatprep.subr.mxu0 0.0
        %666 = vmatpush2.msra.mxu0 0.0
        %667 = vmatprep.subr.mxu0 0.0
        %668 = vmatpush2.msra.mxu0 0.0
        %669 = vmatprep.subr.mxu0 0.0
        %670 = vmatpush2.msra.mxu0 0.0
        %671 = vmatprep.subr.mxu0 0.0
        %672 = vmatpush2.msra.mxu0 0.0
        %673 = vmatprep.subr.mxu0 0.0
        %674 = vmatpush2.msra.mxu0 0.0
        %675 = vmatprep.subr.mxu0 0.0
        %676 = vmatpush2.msra.mxu0 0.0
        %677 = vmatprep.subr.mxu0 0.0
        %678 = vmatpush2.msra.mxu0 0.0
        %679 = vmatprep.subr.mxu0 0.0
        %680 = vmatpush2.msra.mxu0 0.0
        %681 = vmatprep.subr.mxu0 0.0
        %682 = vmatpush2.msra.mxu0 0.0
        %683 = vmatprep.subr.mxu0 0.0
        %684 = vmatpush2.msra.mxu0 0.0
        %685 = vmatprep.subr.mxu0 0.0
        %686 = vmatpush2.msra.mxu0 0.0
        %687 = vmatprep.subr.mxu0 0.0
        %688 = vmatpush2.msra.mxu0 0.0
        %689 = vmatprep.subr.mxu0 0.0
        %690 = vmatpush2.msra.mxu0 0.0
        %691 = vmatprep.subr.mxu0 0.0
        %692 = vmatpush2.msra.mxu0 0.0
        %693 = vmatprep.subr.mxu0 0.0
        %694 = vmatpush2.msra.mxu0 0.0
        %695 = vmatprep.mubr.f32.mxu0 0.0
        %696 = vmatmul.mubr.f32.gmra.mxu0 %v500
        %v697 = vpop.f32.mrf.mxu0
        %v698 = vadd.f32 0.0, %v697
        %v699 = vpop.f32.mrf.mxu0
        %700 = vmatprep.mubr.f32.mxu0 0.0
        %701 = vmatmul.mubr.f32.gmra.mxu0 %v503
        %v702 = vpop.f32.mrf.mxu0
        %v703 = vadd.f32 0.0, %v702
        %v704 = vpop.f32.mrf.mxu0
        %705 = vmatprep.mubr.f32.mxu0 0.0
        %706 = vmatmul.mubr.f32.gmra.mxu0 %v506
        %v707 = vpop.f32.mrf.mxu0
        %v708 = vadd.f32 0.0, %v707
        %v709 = vpop.f32.mrf.mxu0
        %710 = vmatprep.mubr.f32.mxu0 0.0
        %711 = vmatmul.mubr.f32.gmra.mxu0 %v509
        %v712 = vpop.f32.mrf.mxu0
        %v713 = vadd.f32 0.0, %v712
        %v714 = vpop.f32.mrf.mxu0
        %715 = vmatprep.mubr.f32.mxu0 0.0
        %716 = vmatmul.mubr.f32.gmra.mxu0 %v512
        %v717 = vpop.f32.mrf.mxu0
        %v718 = vadd.f32 0.0, %v717
        %v719 = vpop.f32.mrf.mxu0
        %720 = vmatprep.mubr.f32.mxu0 0.0
        %721 = vmatmul.mubr.f32.gmra.mxu0 %v515
        %v722 = vpop.f32.mrf.mxu0
        %v723 = vadd.f32 0.0, %v722
        %v724 = vpop.f32.mrf.mxu0
        %725 = vdwg.mxu0
        %v726 = vadd.f32 %v625, %v698
        %v727 = vadd.f32 %v626, %v703
        %v728 = vadd.f32 %v627, %v708
        %v729 = vadd.f32 %v628, %v713
        %v730 = vadd.f32 %v629, %v718
        %v731 = vadd.f32 %v630, %v723
        %732 = vst.msk [vmem:[#allocation3] sm:$0xff] %vm618, %v726
        %733 = vst.msk [vmem:[#allocation3 + $0x8] sm:$0xff] %vm618, %v727
        %734 = vst.msk [vmem:[#allocation3 + $0x10] sm:$0xff] %vm618, %v728
        %735 = vst.msk [vmem:[#allocation3 + $0x18] sm:$0xff] %vm618, %v729
        %736 = vst.msk [vmem:[#allocation3 + $0x20] sm:$0xff] %vm618, %v730
        %737 = vst.msk [vmem:[#allocation3 + $0x28] sm:$0xff] %vm618, %v731
        %v738 = vld [vmem:[#allocation4] sm:$0xff]
        %v739 = vld [vmem:[#allocation4 + $0x8] sm:$0xff]
        %v740 = vld [vmem:[#allocation4 + $0x10] sm:$0xff]
        %v741 = vld [vmem:[#allocation4 + $0x18] sm:$0xff]
        %v742 = vld [vmem:[#allocation4 + $0x20] sm:$0xff]
        %v743 = vld [vmem:[#allocation4 + $0x28] sm:$0xff]
        %744 = vmatprep.subr.mxu0 0.0
        %745 = vmatpush1.msra.mxu0 0.0
        %746 = vmatprep.subr.mxu0 0.0
        %747 = vmatpush1.msra.mxu0 0.0
        %748 = vmatprep.subr.mxu0 0.0
        %749 = vmatpush1.msra.mxu0 0.0
        %750 = vmatprep.subr.mxu0 0.0
        %751 = vmatpush1.msra.mxu0 0.0
        %752 = vmatprep.subr.mxu0 0.0
        %753 = vmatpush1.msra.mxu0 0.0
        %754 = vmatprep.subr.mxu0 0.0
        %755 = vmatpush1.msra.mxu0 0.0
        %756 = vmatprep.subr.mxu0 0.0
        %757 = vmatpush1.msra.mxu0 0.0
        %758 = vmatprep.subr.mxu0 0.0
        %759 = vmatpush1.msra.mxu0 0.0
        %760 = vmatprep.subr.mxu0 0.0
        %761 = vmatpush1.msra.mxu0 0.0
        %762 = vmatprep.subr.mxu0 0.0
        %763 = vmatpush1.msra.mxu0 0.0
        %764 = vmatprep.subr.mxu0 0.0
        %765 = vmatpush1.msra.mxu0 0.0
        %766 = vmatprep.subr.mxu0 0.0
        %767 = vmatpush1.msra.mxu0 0.0
        %768 = vmatprep.subr.mxu0 0.0
        %769 = vmatpush1.msra.mxu0 %v354
        %770 = vmatprep.subr.mxu0 0.0
        %771 = vmatpush1.msra.mxu0 %v353
        %772 = vmatprep.subr.mxu0 0.0
        %773 = vmatpush1.msra.mxu0 %v352
        %774 = vmatprep.subr.mxu0 0.0
        %775 = vmatpush1.msra.mxu0 %v351
        %776 = vmatprep.subr.mxu0 0.0
        %777 = vmatpush2.msra.mxu0 0.0
        %778 = vmatprep.subr.mxu0 0.0
        %779 = vmatpush2.msra.mxu0 0.0
        %780 = vmatprep.subr.mxu0 0.0
        %781 = vmatpush2.msra.mxu0 0.0
        %782 = vmatprep.subr.mxu0 0.0
        %783 = vmatpush2.msra.mxu0 0.0
        %784 = vmatprep.subr.mxu0 0.0
        %785 = vmatpush2.msra.mxu0 0.0
        %786 = vmatprep.subr.mxu0 0.0
        %787 = vmatpush2.msra.mxu0 0.0
        %788 = vmatprep.subr.mxu0 0.0
        %789 = vmatpush2.msra.mxu0 0.0
        %790 = vmatprep.subr.mxu0 0.0
        %791 = vmatpush2.msra.mxu0 0.0
        %792 = vmatprep.subr.mxu0 0.0
        %793 = vmatpush2.msra.mxu0 0.0
        %794 = vmatprep.subr.mxu0 0.0
        %795 = vmatpush2.msra.mxu0 0.0
        %796 = vmatprep.subr.mxu0 0.0
        %797 = vmatpush2.msra.mxu0 0.0
        %798 = vmatprep.subr.mxu0 0.0
        %799 = vmatpush2.msra.mxu0 0.0
        %800 = vmatprep.subr.mxu0 0.0
        %801 = vmatpush2.msra.mxu0 0.0
        %802 = vmatprep.subr.mxu0 0.0
        %803 = vmatpush2.msra.mxu0 0.0
        %804 = vmatprep.subr.mxu0 0.0
        %805 = vmatpush2.msra.mxu0 0.0
        %806 = vmatprep.subr.mxu0 0.0
        %807 = vmatpush2.msra.mxu0 0.0
        %808 = vmatprep.mubr.f32.mxu0 0.0
        %809 = vmatmul.mubr.f32.gmra.mxu0 %v500
        %v810 = vpop.f32.mrf.mxu0
        %v811 = vadd.f32 0.0, %v810
        %v812 = vpop.f32.mrf.mxu0
        %813 = vmatprep.mubr.f32.mxu0 0.0
        %814 = vmatmul.mubr.f32.gmra.mxu0 %v503
        %v815 = vpop.f32.mrf.mxu0
        %v816 = vadd.f32 0.0, %v815
        %v817 = vpop.f32.mrf.mxu0
        %818 = vmatprep.mubr.f32.mxu0 0.0
        %819 = vmatmul.mubr.f32.gmra.mxu0 %v506
        %v820 = vpop.f32.mrf.mxu0
        %v821 = vadd.f32 0.0, %v820
        %v822 = vpop.f32.mrf.mxu0
        %823 = vmatprep.mubr.f32.mxu0 0.0
        %824 = vmatmul.mubr.f32.gmra.mxu0 %v509
        %v825 = vpop.f32.mrf.mxu0
        %v826 = vadd.f32 0.0, %v825
        %v827 = vpop.f32.mrf.mxu0
        %828 = vmatprep.mubr.f32.mxu0 0.0
        %829 = vmatmul.mubr.f32.gmra.mxu0 %v512
        %v830 = vpop.f32.mrf.mxu0
        %v831 = vadd.f32 0.0, %v830
        %v832 = vpop.f32.mrf.mxu0
        %833 = vmatprep.mubr.f32.mxu0 0.0
        %834 = vmatmul.mubr.f32.gmra.mxu0 %v515
        %v835 = vpop.f32.mrf.mxu0
        %v836 = vadd.f32 0.0, %v835
        %v837 = vpop.f32.mrf.mxu0
        %838 = vdwg.mxu0
        %v839 = vadd.f32 %v738, %v811
        %v840 = vadd.f32 %v739, %v816
        %v841 = vadd.f32 %v740, %v821
        %v842 = vadd.f32 %v741, %v826
        %v843 = vadd.f32 %v742, %v831
        %v844 = vadd.f32 %v743, %v836
        %845 = vst.msk [vmem:[#allocation4] sm:$0xff] %vm618, %v839
        %846 = vst.msk [vmem:[#allocation4 + $0x8] sm:$0xff] %vm618, %v840
        %847 = vst.msk [vmem:[#allocation4 + $0x10] sm:$0xff] %vm618, %v841
        %848 = vst.msk [vmem:[#allocation4 + $0x18] sm:$0xff] %vm618, %v842
        %849 = vst.msk [vmem:[#allocation4 + $0x20] sm:$0xff] %vm618, %v843
        %850 = vst.msk [vmem:[#allocation4 + $0x28] sm:$0xff] %vm618, %v844
        %p851 = scmp.eq.s32.totalorder %s22, 3
        %p852 = pnand %p279, %p851
        %p853 = pneg %p852
        // Predicated region
        $region49: #{usl_loss.1} parent=39 // pred_check
          _
        $region50: #{usl_loss.1} parent=39 // pred_check_branch
          %855 = sbr.rel (%p852) target = $region52
        $region51: #{usl_loss.1} parent=39 // pred_region
          %v856 = vld [vmem:[#allocation5] sm:$0xff]
          %v857 = vld [vmem:[#allocation5 + $0x8] sm:$0xff]
          %v858 = vld [vmem:[#allocation5 + $0x10] sm:$0xff]
          %v859 = vld [vmem:[#allocation5 + $0x18] sm:$0xff]
          %v860 = vld [vmem:[#allocation5 + $0x20] sm:$0xff]
          %v861 = vld [vmem:[#allocation5 + $0x28] sm:$0xff]
          %v862 = vld [vmem:[#allocation2] sm:$0xff]
          %v863 = vld [vmem:[#allocation2 + $0x8] sm:$0xff]
          %v864 = vld [vmem:[#allocation2 + $0x10] sm:$0xff]
          %v865 = vld [vmem:[#allocation2 + $0x18] sm:$0xff]
          %v866 = vld [vmem:[#allocation2 + $0x20] sm:$0xff]
          %v867 = vld [vmem:[#allocation2 + $0x28] sm:$0xff]
          %v868 = vld [vmem:[#allocation6] sm:$0xff]
          %v869 = vld [vmem:[#allocation6 + $0x8] sm:$0xff]
          %v870 = vld [vmem:[#allocation6 + $0x10] sm:$0xff]
          %v871 = vld [vmem:[#allocation6 + $0x18] sm:$0xff]
          %v872 = vld [vmem:[#allocation6 + $0x20] sm:$0xff]
          %v873 = vld [vmem:[#allocation6 + $0x28] sm:$0xff]
          %v874 = vld [vmem:[#allocation3] sm:$0xff]
          %v875 = vld [vmem:[#allocation3 + $0x8] sm:$0xff]
          %v876 = vld [vmem:[#allocation3 + $0x10] sm:$0xff]
          %v877 = vld [vmem:[#allocation3 + $0x18] sm:$0xff]
          %v878 = vld [vmem:[#allocation3 + $0x20] sm:$0xff]
          %v879 = vld [vmem:[#allocation3 + $0x28] sm:$0xff]
          %v880 = vld [vmem:[#allocation7] sm:$0xff]
          %v881 = vld [vmem:[#allocation7 + $0x8] sm:$0xff]
          %v882 = vld [vmem:[#allocation7 + $0x10] sm:$0xff]
          %v883 = vld [vmem:[#allocation7 + $0x18] sm:$0xff]
          %v884 = vld [vmem:[#allocation7 + $0x20] sm:$0xff]
          %v885 = vld [vmem:[#allocation7 + $0x28] sm:$0xff]
          %v886 = vld [vmem:[#allocation4] sm:$0xff]
          %v887 = vld [vmem:[#allocation4 + $0x8] sm:$0xff]
          %v888 = vld [vmem:[#allocation4 + $0x10] sm:$0xff]
          %v889 = vld [vmem:[#allocation4 + $0x18] sm:$0xff]
          %v890 = vld [vmem:[#allocation4 + $0x20] sm:$0xff]
          %v891 = vld [vmem:[#allocation4 + $0x28] sm:$0xff]
          %v892 = vld [vmem:[%s3] sm:$0xff]
          %v893 = vld [vmem:[%s3 + $0x8] sm:$0xff]
          %v894 = vld [vmem:[%s3 + $0x10] sm:$0xff]
          %v895 = vld [vmem:[%s3 + $0x18] sm:$0xff]
          %v896 = vld [vmem:[%s3 + $0x20] sm:$0xff]
          %v897 = vld [vmem:[%s3 + $0x28] sm:$0xff]
          %v898 = vld [vmem:[%s3 + $0x30] sm:$0xff]
          %v899 = vld [vmem:[%s3 + $0x38] sm:$0xff]
          %v900 = vld [vmem:[%s3 + $0x40] sm:$0xff]
          %v901 = vld [vmem:[%s3 + $0x48] sm:$0xff]
          %v902 = vld [vmem:[%s3 + $0x50] sm:$0xff]
          %v903 = vld [vmem:[%s3 + $0x58] sm:$0xff]
          %v904 = vld [vmem:[%s3 + $0x60] sm:$0xff]
          %v905 = vld [vmem:[%s3 + $0x68] sm:$0xff]
          %v906 = vld [vmem:[%s3 + $0x70] sm:$0xff]
          %v907 = vld [vmem:[%s3 + $0x78] sm:$0xff]
          %v908 = vld [vmem:[%s3 + $0x80] sm:$0xff]
          %v909 = vld [vmem:[%s3 + $0x88] sm:$0xff]
          %v910 = vld [vmem:[%s4] sm:$0xff]
          %v911 = vld [vmem:[%s4 + $0x8] sm:$0xff]
          %v912 = vld [vmem:[%s4 + $0x10] sm:$0xff]
          %v913 = vld [vmem:[%s4 + $0x18] sm:$0xff]
          %v914 = vld [vmem:[%s4 + $0x20] sm:$0xff]
          %v915 = vld [vmem:[%s4 + $0x28] sm:$0xff]
          %v916 = vlaneseq
          %v917 = vshrl.u32 %v916, 7
          %v918 = vadd.s32 %v917, 8
          %v919 = vadd.s32 %v917, 16
          %v920 = vadd.s32 %v917, 24
          %v921 = vadd.s32 %v917, 32
          %v922 = vadd.s32 %v917, 40
          %v923 = vlaneseq
          %v924 = vand.u32 %v923, 127
          %vm925 = vcmp.eq.s32.totalorder %v917, %v924
          %vm926 = vcmp.eq.s32.totalorder %v918, %v924
          %vm927 = vcmp.eq.s32.totalorder %v919, %v924
          %vm928 = vcmp.eq.s32.totalorder %v920, %v924
          %vm929 = vcmp.eq.s32.totalorder %v921, %v924
          %vm930 = vcmp.eq.s32.totalorder %v922, %v924
          %v931 = vsel %vm925, 1, 0
          %v932 = vsel %vm926, 1, 0
          %v933 = vsel %vm927, 1, 0
          %v934 = vsel %vm928, 1, 0
          %v935 = vsel %vm929, 1, 0
          %v936 = vsel %vm930, 1, 0
          %v937 = vcvt.s32.f32 %v931
          %v938 = vcvt.s32.f32 %v932
          %v939 = vcvt.s32.f32 %v933
          %v940 = vcvt.s32.f32 %v934
          %v941 = vcvt.s32.f32 %v935
          %v942 = vcvt.s32.f32 %v936
          %v943 = vsub.f32 1.0, %v937
          %v944 = vsub.f32 1.0, %v938
          %v945 = vsub.f32 1.0, %v939
          %v946 = vsub.f32 1.0, %v940
          %v947 = vsub.f32 1.0, %v941
          %v948 = vsub.f32 1.0, %v942
          %v949 = vsub.f32 %v856, %v937
          %v950 = vsub.f32 %v857, %v938
          %v951 = vsub.f32 %v858, %v939
          %v952 = vsub.f32 %v859, %v940
          %v953 = vsub.f32 %v860, %v941
          %v954 = vsub.f32 %v861, %v942
          %v955 = vsub.f32 %v862, %v937
          %v956 = vsub.f32 %v863, %v938
          %v957 = vsub.f32 %v864, %v939
          %v958 = vsub.f32 %v865, %v940
          %v959 = vsub.f32 %v866, %v941
          %v960 = vsub.f32 %v867, %v942
          %v962 = vsel %vm618, %v892, 0
          %v965 = vsel %vm618, %v893, 0
          %v968 = vsel %vm618, %v894, 0
          %v971 = vsel %vm618, %v895, 0
          %v974 = vsel %vm618, %v896, 0
          %v977 = vsel %vm618, %v897, 0
          %979 = vmatprep.subr.mxu0 0.0
          %980 = vmatpush1.xpose.msra.mxu0 0.0
          %981 = vmatprep.subr.mxu0 0.0
          %982 = vmatpush1.xpose.msra.mxu0 0.0
          %983 = vmatprep.subr.mxu0 0.0
          %984 = vmatpush1.xpose.msra.mxu0 0.0
          %985 = vmatprep.subr.mxu0 0.0
          %986 = vmatpush1.xpose.msra.mxu0 0.0
          %987 = vmatprep.subr.mxu0 0.0
          %988 = vmatpush1.xpose.msra.mxu0 0.0
          %989 = vmatprep.subr.mxu0 0.0
          %990 = vmatpush1.xpose.msra.mxu0 0.0
          %991 = vmatprep.subr.mxu0 0.0
          %992 = vmatpush1.xpose.msra.mxu0 0.0
          %993 = vmatprep.subr.mxu0 0.0
          %994 = vmatpush1.xpose.msra.mxu0 0.0
          %995 = vmatprep.subr.mxu0 0.0
          %996 = vmatpush1.xpose.msra.mxu0 0.0
          %997 = vmatprep.subr.mxu0 0.0
          %998 = vmatpush1.xpose.msra.mxu0 0.0
          %999 = vmatprep.subr.mxu0 0.0
          %1000 = vmatpush1.xpose.msra.mxu0 %v977
          %1001 = vmatprep.subr.mxu0 0.0
          %1002 = vmatpush1.xpose.msra.mxu0 %v974
          %1003 = vmatprep.subr.mxu0 0.0
          %1004 = vmatpush1.xpose.msra.mxu0 %v971
          %1005 = vmatprep.subr.mxu0 0.0
          %1006 = vmatpush1.xpose.msra.mxu0 %v968
          %1007 = vmatprep.subr.mxu0 0.0
          %1008 = vmatpush1.xpose.msra.mxu0 %v965
          %1009 = vmatprep.subr.mxu0 0.0
          %1010 = vmatpush1.xpose.msra.mxu0 %v962
          %1011 = vmatprep.subr.mxu0 0.0
          %1012 = vmatpush2.xpose.msra.mxu0 0.0
          %1013 = vmatprep.subr.mxu0 0.0
          %1014 = vmatpush2.xpose.msra.mxu0 0.0
          %1015 = vmatprep.subr.mxu0 0.0
          %1016 = vmatpush2.xpose.msra.mxu0 0.0
          %1017 = vmatprep.subr.mxu0 0.0
          %1018 = vmatpush2.xpose.msra.mxu0 0.0
          %1019 = vmatprep.subr.mxu0 0.0
          %1020 = vmatpush2.xpose.msra.mxu0 0.0
          %1021 = vmatprep.subr.mxu0 0.0
          %1022 = vmatpush2.xpose.msra.mxu0 0.0
          %1023 = vmatprep.subr.mxu0 0.0
          %1024 = vmatpush2.xpose.msra.mxu0 0.0
          %1025 = vmatprep.subr.mxu0 0.0
          %1026 = vmatpush2.xpose.msra.mxu0 0.0
          %1027 = vmatprep.subr.mxu0 0.0
          %1028 = vmatpush2.xpose.msra.mxu0 0.0
          %1029 = vmatprep.subr.mxu0 0.0
          %1030 = vmatpush2.xpose.msra.mxu0 0.0
          %1031 = vmatprep.subr.mxu0 0.0
          %1032 = vmatpush2.xpose.msra.mxu0 0.0
          %1033 = vmatprep.subr.mxu0 0.0
          %1034 = vmatpush2.xpose.msra.mxu0 0.0
          %1035 = vmatprep.subr.mxu0 0.0
          %1036 = vmatpush2.xpose.msra.mxu0 0.0
          %1037 = vmatprep.subr.mxu0 0.0
          %1038 = vmatpush2.xpose.msra.mxu0 0.0
          %1039 = vmatprep.subr.mxu0 0.0
          %1040 = vmatpush2.xpose.msra.mxu0 0.0
          %1041 = vmatprep.subr.mxu0 0.0
          %1042 = vmatpush2.xpose.msra.mxu0 0.0
          %1043 = vmatprep.mubr.f32.mxu0 0.0
          %1044 = vmatmul.mubr.f32.gmra.mxu0 %v962
          %v1045 = vpop.f32.mrf.mxu0
          %v1046 = vadd.f32 0.0, %v1045
          %v1047 = vpop.f32.mrf.mxu0
          %1048 = vmatprep.mubr.f32.mxu0 0.0
          %1049 = vmatmul.mubr.f32.gmra.mxu0 %v965
          %v1050 = vpop.f32.mrf.mxu0
          %v1051 = vadd.f32 0.0, %v1050
          %v1052 = vpop.f32.mrf.mxu0
          %1053 = vmatprep.mubr.f32.mxu0 0.0
          %1054 = vmatmul.mubr.f32.gmra.mxu0 %v968
          %v1055 = vpop.f32.mrf.mxu0
          %v1056 = vadd.f32 0.0, %v1055
          %v1057 = vpop.f32.mrf.mxu0
          %1058 = vmatprep.mubr.f32.mxu0 0.0
          %1059 = vmatmul.mubr.f32.gmra.mxu0 %v971
          %v1060 = vpop.f32.mrf.mxu0
          %v1061 = vadd.f32 0.0, %v1060
          %v1062 = vpop.f32.mrf.mxu0
          %1063 = vmatprep.mubr.f32.mxu0 0.0
          %1064 = vmatmul.mubr.f32.gmra.mxu0 %v974
          %v1065 = vpop.f32.mrf.mxu0
          %v1066 = vadd.f32 0.0, %v1065
          %v1067 = vpop.f32.mrf.mxu0
          %1068 = vmatprep.mubr.f32.mxu0 0.0
          %1069 = vmatmul.mubr.f32.gmra.mxu0 %v977
          %v1070 = vpop.f32.mrf.mxu0
          %v1071 = vadd.f32 0.0, %v1070
          %v1072 = vpop.f32.mrf.mxu0
          %1073 = vdwg.mxu0
          %v1074 = vsub.f32 %v1046, %v937
          %v1075 = vsub.f32 %v1051, %v938
          %v1076 = vsub.f32 %v1056, %v939
          %v1077 = vsub.f32 %v1061, %v940
          %v1078 = vsub.f32 %v1066, %v941
          %v1079 = vsub.f32 %v1071, %v942
          %v1081 = vsel %vm618, %v898, 0
          %v1084 = vsel %vm618, %v899, 0
          %v1087 = vsel %vm618, %v900, 0
          %v1090 = vsel %vm618, %v901, 0
          %v1093 = vsel %vm618, %v902, 0
          %v1096 = vsel %vm618, %v903, 0
          %1098 = vmatprep.subr.mxu0 0.0
          %1099 = vmatpush1.xpose.msra.mxu0 0.0
          %1100 = vmatprep.subr.mxu0 0.0
          %1101 = vmatpush1.xpose.msra.mxu0 0.0
          %1102 = vmatprep.subr.mxu0 0.0
          %1103 = vmatpush1.xpose.msra.mxu0 0.0
          %1104 = vmatprep.subr.mxu0 0.0
          %1105 = vmatpush1.xpose.msra.mxu0 0.0
          %1106 = vmatprep.subr.mxu0 0.0
          %1107 = vmatpush1.xpose.msra.mxu0 0.0
          %1108 = vmatprep.subr.mxu0 0.0
          %1109 = vmatpush1.xpose.msra.mxu0 0.0
          %1110 = vmatprep.subr.mxu0 0.0
          %1111 = vmatpush1.xpose.msra.mxu0 0.0
          %1112 = vmatprep.subr.mxu0 0.0
          %1113 = vmatpush1.xpose.msra.mxu0 0.0
          %1114 = vmatprep.subr.mxu0 0.0
          %1115 = vmatpush1.xpose.msra.mxu0 0.0
          %1116 = vmatprep.subr.mxu0 0.0
          %1117 = vmatpush1.xpose.msra.mxu0 0.0
          %1118 = vmatprep.subr.mxu0 0.0
          %1119 = vmatpush1.xpose.msra.mxu0 %v1096
          %1120 = vmatprep.subr.mxu0 0.0
          %1121 = vmatpush1.xpose.msra.mxu0 %v1093
          %1122 = vmatprep.subr.mxu0 0.0
          %1123 = vmatpush1.xpose.msra.mxu0 %v1090
          %1124 = vmatprep.subr.mxu0 0.0
          %1125 = vmatpush1.xpose.msra.mxu0 %v1087
          %1126 = vmatprep.subr.mxu0 0.0
          %1127 = vmatpush1.xpose.msra.mxu0 %v1084
          %1128 = vmatprep.subr.mxu0 0.0
          %1129 = vmatpush1.xpose.msra.mxu0 %v1081
          %1130 = vmatprep.subr.mxu0 0.0
          %1131 = vmatpush2.xpose.msra.mxu0 0.0
          %1132 = vmatprep.subr.mxu0 0.0
          %1133 = vmatpush2.xpose.msra.mxu0 0.0
          %1134 = vmatprep.subr.mxu0 0.0
          %1135 = vmatpush2.xpose.msra.mxu0 0.0
          %1136 = vmatprep.subr.mxu0 0.0
          %1137 = vmatpush2.xpose.msra.mxu0 0.0
          %1138 = vmatprep.subr.mxu0 0.0
          %1139 = vmatpush2.xpose.msra.mxu0 0.0
          %1140 = vmatprep.subr.mxu0 0.0
          %1141 = vmatpush2.xpose.msra.mxu0 0.0
          %1142 = vmatprep.subr.mxu0 0.0
          %1143 = vmatpush2.xpose.msra.mxu0 0.0
          %1144 = vmatprep.subr.mxu0 0.0
          %1145 = vmatpush2.xpose.msra.mxu0 0.0
          %1146 = vmatprep.subr.mxu0 0.0
          %1147 = vmatpush2.xpose.msra.mxu0 0.0
          %1148 = vmatprep.subr.mxu0 0.0
          %1149 = vmatpush2.xpose.msra.mxu0 0.0
          %1150 = vmatprep.subr.mxu0 0.0
          %1151 = vmatpush2.xpose.msra.mxu0 0.0
          %1152 = vmatprep.subr.mxu0 0.0
          %1153 = vmatpush2.xpose.msra.mxu0 0.0
          %1154 = vmatprep.subr.mxu0 0.0
          %1155 = vmatpush2.xpose.msra.mxu0 0.0
          %1156 = vmatprep.subr.mxu0 0.0
          %1157 = vmatpush2.xpose.msra.mxu0 0.0
          %1158 = vmatprep.subr.mxu0 0.0
          %1159 = vmatpush2.xpose.msra.mxu0 0.0
          %1160 = vmatprep.subr.mxu0 0.0
          %1161 = vmatpush2.xpose.msra.mxu0 0.0
          %1162 = vmatprep.mubr.f32.mxu0 0.0
          %1163 = vmatmul.mubr.f32.gmra.mxu0 %v1081
          %v1164 = vpop.f32.mrf.mxu0
          %v1165 = vadd.f32 0.0, %v1164
          %v1166 = vpop.f32.mrf.mxu0
          %1167 = vmatprep.mubr.f32.mxu0 0.0
          %1168 = vmatmul.mubr.f32.gmra.mxu0 %v1084
          %v1169 = vpop.f32.mrf.mxu0
          %v1170 = vadd.f32 0.0, %v1169
          %v1171 = vpop.f32.mrf.mxu0
          %1172 = vmatprep.mubr.f32.mxu0 0.0
          %1173 = vmatmul.mubr.f32.gmra.mxu0 %v1087
          %v1174 = vpop.f32.mrf.mxu0
          %v1175 = vadd.f32 0.0, %v1174
          %v1176 = vpop.f32.mrf.mxu0
          %1177 = vmatprep.mubr.f32.mxu0 0.0
          %1178 = vmatmul.mubr.f32.gmra.mxu0 %v1090
          %v1179 = vpop.f32.mrf.mxu0
          %v1180 = vadd.f32 0.0, %v1179
          %v1181 = vpop.f32.mrf.mxu0
          %1182 = vmatprep.mubr.f32.mxu0 0.0
          %1183 = vmatmul.mubr.f32.gmra.mxu0 %v1093
          %v1184 = vpop.f32.mrf.mxu0
          %v1185 = vadd.f32 0.0, %v1184
          %v1186 = vpop.f32.mrf.mxu0
          %1187 = vmatprep.mubr.f32.mxu0 0.0
          %1188 = vmatmul.mubr.f32.gmra.mxu0 %v1096
          %v1189 = vpop.f32.mrf.mxu0
          %v1190 = vadd.f32 0.0, %v1189
          %v1191 = vpop.f32.mrf.mxu0
          %1192 = vdwg.mxu0
          %v1193 = vsub.f32 %v1165, %v937
          %v1194 = vsub.f32 %v1170, %v938
          %v1195 = vsub.f32 %v1175, %v939
          %v1196 = vsub.f32 %v1180, %v940
          %v1197 = vsub.f32 %v1185, %v941
          %v1198 = vsub.f32 %v1190, %v942
          %v1199 = vmul.f32 %v949, %v949
          %v1200 = vmul.f32 %v950, %v950
          %v1201 = vmul.f32 %v951, %v951
          %v1202 = vmul.f32 %v952, %v952
          %v1203 = vmul.f32 %v953, %v953
          %v1204 = vmul.f32 %v954, %v954
          %v1205 = vmul.f32 %v955, %v955
          %v1206 = vmul.f32 %v956, %v956
          %v1207 = vmul.f32 %v957, %v957
          %v1208 = vmul.f32 %v958, %v958
          %v1209 = vmul.f32 %v959, %v959
          %v1210 = vmul.f32 %v960, %v960
          %v1211 = vadd.f32 %v1199, %v1205
          %v1212 = vadd.f32 %v1200, %v1206
          %v1213 = vadd.f32 %v1201, %v1207
          %v1214 = vadd.f32 %v1202, %v1208
          %v1215 = vadd.f32 %v1203, %v1209
          %v1216 = vadd.f32 %v1204, %v1210
          %v1217 = vmul.f32 %v1211, 0.004340278
          %v1218 = vmul.f32 %v1212, 0.004340278
          %v1219 = vmul.f32 %v1213, 0.004340278
          %v1220 = vmul.f32 %v1214, 0.004340278
          %v1221 = vmul.f32 %v1215, 0.004340278
          %v1222 = vmul.f32 %v1216, 0.004340278
          %v1223 = vand.u32 2147483647, %v868
          %v1224 = vand.u32 2147483647, %v869
          %v1225 = vand.u32 2147483647, %v870
          %v1226 = vand.u32 2147483647, %v871
          %v1227 = vand.u32 2147483647, %v872
          %v1228 = vand.u32 2147483647, %v873
          %v1229 = vand.u32 2147483647, %v874
          %v1230 = vand.u32 2147483647, %v875
          %v1231 = vand.u32 2147483647, %v876
          %v1232 = vand.u32 2147483647, %v877
          %v1233 = vand.u32 2147483647, %v878
          %v1234 = vand.u32 2147483647, %v879
          %v1235 = vadd.f32 %v1223, %v1229
          %v1236 = vadd.f32 %v1224, %v1230
          %v1237 = vadd.f32 %v1225, %v1231
          %v1238 = vadd.f32 %v1226, %v1232
          %v1239 = vadd.f32 %v1227, %v1233
          %v1240 = vadd.f32 %v1228, %v1234
          %v1241 = vmul.f32 %v1235, 0.004340278
          %v1242 = vmul.f32 %v1236, 0.004340278
          %v1243 = vmul.f32 %v1237, 0.004340278
          %v1244 = vmul.f32 %v1238, 0.004340278
          %v1245 = vmul.f32 %v1239, 0.004340278
          %v1246 = vmul.f32 %v1240, 0.004340278
          %v1247 = vmul.f32 %v1241, %v943
          %v1248 = vmul.f32 %v1242, %v944
          %v1249 = vmul.f32 %v1243, %v945
          %v1250 = vmul.f32 %v1244, %v946
          %v1251 = vmul.f32 %v1245, %v947
          %v1252 = vmul.f32 %v1246, %v948
          %v1253 = vadd.f32 %v1217, %v1247
          %v1254 = vadd.f32 %v1218, %v1248
          %v1255 = vadd.f32 %v1219, %v1249
          %v1256 = vadd.f32 %v1220, %v1250
          %v1257 = vadd.f32 %v1221, %v1251
          %v1258 = vadd.f32 %v1222, %v1252
          %v1259 = vmul.f32 %v1074, %v1074
          %v1260 = vmul.f32 %v1075, %v1075
          %v1261 = vmul.f32 %v1076, %v1076
          %v1262 = vmul.f32 %v1077, %v1077
          %v1263 = vmul.f32 %v1078, %v1078
          %v1264 = vmul.f32 %v1079, %v1079
          %v1265 = vmul.f32 %v1193, %v1193
          %v1266 = vmul.f32 %v1194, %v1194
          %v1267 = vmul.f32 %v1195, %v1195
          %v1268 = vmul.f32 %v1196, %v1196
          %v1269 = vmul.f32 %v1197, %v1197
          %v1270 = vmul.f32 %v1198, %v1198
          %v1271 = vadd.f32 %v1259, %v1265
          %v1272 = vadd.f32 %v1260, %v1266
          %v1273 = vadd.f32 %v1261, %v1267
          %v1274 = vadd.f32 %v1262, %v1268
          %v1275 = vadd.f32 %v1263, %v1269
          %v1276 = vadd.f32 %v1264, %v1270
          %v1277 = vmul.f32 %v1271, 0.00043402778
          %v1278 = vmul.f32 %v1272, 0.00043402778
          %v1279 = vmul.f32 %v1273, 0.00043402778
          %v1280 = vmul.f32 %v1274, 0.00043402778
          %v1281 = vmul.f32 %v1275, 0.00043402778
          %v1282 = vmul.f32 %v1276, 0.00043402778
          %v1283 = vadd.f32 %v1253, %v1277
          %v1284 = vadd.f32 %v1254, %v1278
          %v1285 = vadd.f32 %v1255, %v1279
          %v1286 = vadd.f32 %v1256, %v1280
          %v1287 = vadd.f32 %v1257, %v1281
          %v1288 = vadd.f32 %v1258, %v1282
          %vm1289 = vcmp.lt.s32.totalorder %v924, 32
          %v1291 = vsel %vm618, %v904, 0
          %v1294 = vsel %vm618, %v905, 0
          %v1297 = vsel %vm618, %v906, 0
          %v1300 = vsel %vm618, %v907, 0
          %v1303 = vsel %vm618, %v908, 0
          %v1306 = vsel %vm618, %v909, 0
          %1308 = vmatprep.subr.mxu0 0.0
          %1309 = vmatpush1.msra.mxu0 0.0
          %1310 = vmatprep.subr.mxu0 0.0
          %1311 = vmatpush1.msra.mxu0 0.0
          %1312 = vmatprep.subr.mxu0 0.0
          %1313 = vmatpush1.msra.mxu0 0.0
          %1314 = vmatprep.subr.mxu0 0.0
          %1315 = vmatpush1.msra.mxu0 0.0
          %1316 = vmatprep.subr.mxu0 0.0
          %1317 = vmatpush1.msra.mxu0 0.0
          %1318 = vmatprep.subr.mxu0 0.0
          %1319 = vmatpush1.msra.mxu0 0.0
          %1320 = vmatprep.subr.mxu0 0.0
          %1321 = vmatpush1.msra.mxu0 0.0
          %1322 = vmatprep.subr.mxu0 0.0
          %1323 = vmatpush1.msra.mxu0 0.0
          %1324 = vmatprep.subr.mxu0 0.0
          %1325 = vmatpush1.msra.mxu0 0.0
          %1326 = vmatprep.subr.mxu0 0.0
          %1327 = vmatpush1.msra.mxu0 0.0
          %1328 = vmatprep.subr.mxu0 0.0
          %1329 = vmatpush1.msra.mxu0 %v885
          %1330 = vmatprep.subr.mxu0 0.0
          %1331 = vmatpush1.msra.mxu0 %v884
          %1332 = vmatprep.subr.mxu0 0.0
          %1333 = vmatpush1.msra.mxu0 %v883
          %1334 = vmatprep.subr.mxu0 0.0
          %1335 = vmatpush1.msra.mxu0 %v882
          %1336 = vmatprep.subr.mxu0 0.0
          %1337 = vmatpush1.msra.mxu0 %v881
          %1338 = vmatprep.subr.mxu0 0.0
          %1339 = vmatpush1.msra.mxu0 %v880
          %1340 = vmatprep.subr.mxu0 0.0
          %1341 = vmatpush2.msra.mxu0 0.0
          %1342 = vmatprep.subr.mxu0 0.0
          %1343 = vmatpush2.msra.mxu0 0.0
          %1344 = vmatprep.subr.mxu0 0.0
          %1345 = vmatpush2.msra.mxu0 0.0
          %1346 = vmatprep.subr.mxu0 0.0
          %1347 = vmatpush2.msra.mxu0 0.0
          %1348 = vmatprep.subr.mxu0 0.0
          %1349 = vmatpush2.msra.mxu0 0.0
          %1350 = vmatprep.subr.mxu0 0.0
          %1351 = vmatpush2.msra.mxu0 0.0
          %1352 = vmatprep.subr.mxu0 0.0
          %1353 = vmatpush2.msra.mxu0 0.0
          %1354 = vmatprep.subr.mxu0 0.0
          %1355 = vmatpush2.msra.mxu0 0.0
          %1356 = vmatprep.subr.mxu0 0.0
          %1357 = vmatpush2.msra.mxu0 0.0
          %1358 = vmatprep.subr.mxu0 0.0
          %1359 = vmatpush2.msra.mxu0 0.0
          %1360 = vmatprep.subr.mxu0 0.0
          %1361 = vmatpush2.msra.mxu0 0.0
          %1362 = vmatprep.subr.mxu0 0.0
          %1363 = vmatpush2.msra.mxu0 0.0
          %1364 = vmatprep.subr.mxu0 0.0
          %1365 = vmatpush2.msra.mxu0 0.0
          %1366 = vmatprep.subr.mxu0 0.0
          %1367 = vmatpush2.msra.mxu0 0.0
          %1368 = vmatprep.subr.mxu0 0.0
          %1369 = vmatpush2.msra.mxu0 0.0
          %1370 = vmatprep.subr.mxu0 0.0
          %1371 = vmatpush2.msra.mxu0 0.0
          %1372 = vmatprep.mubr.f32.mxu0 0.0
          %1373 = vmatmul.mubr.f32.gmra.mxu0 %v1291
          %v1374 = vpop.f32.mrf.mxu0
          %v1375 = vadd.f32 0.0, %v1374
          %v1376 = vpop.f32.mrf.mxu0
          %1377 = vmatprep.mubr.f32.mxu0 0.0
          %1378 = vmatmul.mubr.f32.gmra.mxu0 %v1294
          %v1379 = vpop.f32.mrf.mxu0
          %v1380 = vadd.f32 0.0, %v1379
          %v1381 = vpop.f32.mrf.mxu0
          %1382 = vmatprep.mubr.f32.mxu0 0.0
          %1383 = vmatmul.mubr.f32.gmra.mxu0 %v1297
          %v1384 = vpop.f32.mrf.mxu0
          %v1385 = vadd.f32 0.0, %v1384
          %v1386 = vpop.f32.mrf.mxu0
          %1387 = vmatprep.mubr.f32.mxu0 0.0
          %1388 = vmatmul.mubr.f32.gmra.mxu0 %v1300
          %v1389 = vpop.f32.mrf.mxu0
          %v1390 = vadd.f32 0.0, %v1389
          %v1391 = vpop.f32.mrf.mxu0
          %1392 = vmatprep.mubr.f32.mxu0 0.0
          %1393 = vmatmul.mubr.f32.gmra.mxu0 %v1303
          %v1394 = vpop.f32.mrf.mxu0
          %v1395 = vadd.f32 0.0, %v1394
          %v1396 = vpop.f32.mrf.mxu0
          %1397 = vmatprep.mubr.f32.mxu0 0.0
          %1398 = vmatmul.mubr.f32.gmra.mxu0 %v1306
          %v1399 = vpop.f32.mrf.mxu0
          %v1400 = vadd.f32 0.0, %v1399
          %v1401 = vpop.f32.mrf.mxu0
          %1402 = vdwg.mxu0
          %1403 = vmatprep.subr.mxu0 0.0
          %1404 = vmatpush1.msra.mxu0 0.0
          %1405 = vmatprep.subr.mxu0 0.0
          %1406 = vmatpush1.msra.mxu0 0.0
          %1407 = vmatprep.subr.mxu0 0.0
          %1408 = vmatpush1.msra.mxu0 0.0
          %1409 = vmatprep.subr.mxu0 0.0
          %1410 = vmatpush1.msra.mxu0 0.0
          %1411 = vmatprep.subr.mxu0 0.0
          %1412 = vmatpush1.msra.mxu0 0.0
          %1413 = vmatprep.subr.mxu0 0.0
          %1414 = vmatpush1.msra.mxu0 0.0
          %1415 = vmatprep.subr.mxu0 0.0
          %1416 = vmatpush1.msra.mxu0 0.0
          %1417 = vmatprep.subr.mxu0 0.0
          %1418 = vmatpush1.msra.mxu0 0.0
          %1419 = vmatprep.subr.mxu0 0.0
          %1420 = vmatpush1.msra.mxu0 0.0
          %1421 = vmatprep.subr.mxu0 0.0
          %1422 = vmatpush1.msra.mxu0 0.0
          %1423 = vmatprep.subr.mxu0 0.0
          %1424 = vmatpush1.msra.mxu0 %v891
          %1425 = vmatprep.subr.mxu0 0.0
          %1426 = vmatpush1.msra.mxu0 %v890
          %1427 = vmatprep.subr.mxu0 0.0
          %1428 = vmatpush1.msra.mxu0 %v889
          %1429 = vmatprep.subr.mxu0 0.0
          %1430 = vmatpush1.msra.mxu0 %v888
          %1431 = vmatprep.subr.mxu0 0.0
          %1432 = vmatpush1.msra.mxu0 %v887
          %1433 = vmatprep.subr.mxu0 0.0
          %1434 = vmatpush1.msra.mxu0 %v886
          %1435 = vmatprep.subr.mxu0 0.0
          %1436 = vmatpush2.msra.mxu0 0.0
          %1437 = vmatprep.subr.mxu0 0.0
          %1438 = vmatpush2.msra.mxu0 0.0
          %1439 = vmatprep.subr.mxu0 0.0
          %1440 = vmatpush2.msra.mxu0 0.0
          %1441 = vmatprep.subr.mxu0 0.0
          %1442 = vmatpush2.msra.mxu0 0.0
          %1443 = vmatprep.subr.mxu0 0.0
          %1444 = vmatpush2.msra.mxu0 0.0
          %1445 = vmatprep.subr.mxu0 0.0
          %1446 = vmatpush2.msra.mxu0 0.0
          %1447 = vmatprep.subr.mxu0 0.0
          %1448 = vmatpush2.msra.mxu0 0.0
          %1449 = vmatprep.subr.mxu0 0.0
          %1450 = vmatpush2.msra.mxu0 0.0
          %1451 = vmatprep.subr.mxu0 0.0
          %1452 = vmatpush2.msra.mxu0 0.0
          %1453 = vmatprep.subr.mxu0 0.0
          %1454 = vmatpush2.msra.mxu0 0.0
          %1455 = vmatprep.subr.mxu0 0.0
          %1456 = vmatpush2.msra.mxu0 0.0
          %1457 = vmatprep.subr.mxu0 0.0
          %1458 = vmatpush2.msra.mxu0 0.0
          %1459 = vmatprep.subr.mxu0 0.0
          %1460 = vmatpush2.msra.mxu0 0.0
          %1461 = vmatprep.subr.mxu0 0.0
          %1462 = vmatpush2.msra.mxu0 0.0
          %1463 = vmatprep.subr.mxu0 0.0
          %1464 = vmatpush2.msra.mxu0 0.0
          %1465 = vmatprep.subr.mxu0 0.0
          %1466 = vmatpush2.msra.mxu0 0.0
          %1467 = vmatprep.mubr.f32.mxu0 0.0
          %1468 = vmatmul.mubr.f32.gmra.mxu0 %v1291
          %v1469 = vpop.f32.mrf.mxu0
          %v1470 = vadd.f32 0.0, %v1469
          %v1471 = vpop.f32.mrf.mxu0
          %1472 = vmatprep.mubr.f32.mxu0 0.0
          %1473 = vmatmul.mubr.f32.gmra.mxu0 %v1294
          %v1474 = vpop.f32.mrf.mxu0
          %v1475 = vadd.f32 0.0, %v1474
          %v1476 = vpop.f32.mrf.mxu0
          %1477 = vmatprep.mubr.f32.mxu0 0.0
          %1478 = vmatmul.mubr.f32.gmra.mxu0 %v1297
          %v1479 = vpop.f32.mrf.mxu0
          %v1480 = vadd.f32 0.0, %v1479
          %v1481 = vpop.f32.mrf.mxu0
          %1482 = vmatprep.mubr.f32.mxu0 0.0
          %1483 = vmatmul.mubr.f32.gmra.mxu0 %v1300
          %v1484 = vpop.f32.mrf.mxu0
          %v1485 = vadd.f32 0.0, %v1484
          %v1486 = vpop.f32.mrf.mxu0
          %1487 = vmatprep.mubr.f32.mxu0 0.0
          %1488 = vmatmul.mubr.f32.gmra.mxu0 %v1303
          %v1489 = vpop.f32.mrf.mxu0
          %v1490 = vadd.f32 0.0, %v1489
          %v1491 = vpop.f32.mrf.mxu0
          %1492 = vmatprep.mubr.f32.mxu0 0.0
          %1493 = vmatmul.mubr.f32.gmra.mxu0 %v1306
          %v1494 = vpop.f32.mrf.mxu0
          %v1495 = vadd.f32 0.0, %v1494
          %v1496 = vpop.f32.mrf.mxu0
          %1497 = vdwg.mxu0
          %1498 = vmatprep.subr.mxu0 0.0
          %1499 = vmatpush1.msra.mxu0 0.0
          %1500 = vmatprep.subr.mxu0 0.0
          %1501 = vmatpush1.msra.mxu0 0.0
          %1502 = vmatprep.subr.mxu0 0.0
          %1503 = vmatpush1.msra.mxu0 0.0
          %1504 = vmatprep.subr.mxu0 0.0
          %1505 = vmatpush1.msra.mxu0 0.0
          %1506 = vmatprep.subr.mxu0 0.0
          %1507 = vmatpush1.msra.mxu0 0.0
          %1508 = vmatprep.subr.mxu0 0.0
          %1509 = vmatpush1.msra.mxu0 0.0
          %1510 = vmatprep.subr.mxu0 0.0
          %1511 = vmatpush1.msra.mxu0 0.0
          %1512 = vmatprep.subr.mxu0 0.0
          %1513 = vmatpush1.msra.mxu0 0.0
          %1514 = vmatprep.subr.mxu0 0.0
          %1515 = vmatpush1.msra.mxu0 0.0
          %1516 = vmatprep.subr.mxu0 0.0
          %1517 = vmatpush1.msra.mxu0 0.0
          %1518 = vmatprep.subr.mxu0 0.0
          %1519 = vmatpush1.msra.mxu0 %v885
          %1520 = vmatprep.subr.mxu0 0.0
          %1521 = vmatpush1.msra.mxu0 %v884
          %1522 = vmatprep.subr.mxu0 0.0
          %1523 = vmatpush1.msra.mxu0 %v883
          %1524 = vmatprep.subr.mxu0 0.0
          %1525 = vmatpush1.msra.mxu0 %v882
          %1526 = vmatprep.subr.mxu0 0.0
          %1527 = vmatpush1.msra.mxu0 %v881
          %1528 = vmatprep.subr.mxu0 0.0
          %1529 = vmatpush1.msra.mxu0 %v880
          %1530 = vmatprep.subr.mxu0 0.0
          %1531 = vmatpush2.msra.mxu0 0.0
          %1532 = vmatprep.subr.mxu0 0.0
          %1533 = vmatpush2.msra.mxu0 0.0
          %1534 = vmatprep.subr.mxu0 0.0
          %1535 = vmatpush2.msra.mxu0 0.0
          %1536 = vmatprep.subr.mxu0 0.0
          %1537 = vmatpush2.msra.mxu0 0.0
          %1538 = vmatprep.subr.mxu0 0.0
          %1539 = vmatpush2.msra.mxu0 0.0
          %1540 = vmatprep.subr.mxu0 0.0
          %1541 = vmatpush2.msra.mxu0 0.0
          %1542 = vmatprep.subr.mxu0 0.0
          %1543 = vmatpush2.msra.mxu0 0.0
          %1544 = vmatprep.subr.mxu0 0.0
          %1545 = vmatpush2.msra.mxu0 0.0
          %1546 = vmatprep.subr.mxu0 0.0
          %1547 = vmatpush2.msra.mxu0 0.0
          %1548 = vmatprep.subr.mxu0 0.0
          %1549 = vmatpush2.msra.mxu0 0.0
          %1550 = vmatprep.subr.mxu0 0.0
          %1551 = vmatpush2.msra.mxu0 0.0
          %1552 = vmatprep.subr.mxu0 0.0
          %1553 = vmatpush2.msra.mxu0 0.0
          %1554 = vmatprep.subr.mxu0 0.0
          %1555 = vmatpush2.msra.mxu0 0.0
          %1556 = vmatprep.subr.mxu0 0.0
          %1557 = vmatpush2.msra.mxu0 0.0
          %1558 = vmatprep.subr.mxu0 0.0
          %1559 = vmatpush2.msra.mxu0 0.0
          %1560 = vmatprep.subr.mxu0 0.0
          %1561 = vmatpush2.msra.mxu0 0.0
          %1562 = vmatprep.mubr.f32.mxu0 0.0
          %1563 = vmatmul.mubr.f32.gmra.mxu0 %v962
          %v1564 = vpop.f32.mrf.mxu0
          %v1565 = vadd.f32 0.0, %v1564
          %v1566 = vpop.f32.mrf.mxu0
          %1567 = vmatprep.mubr.f32.mxu0 0.0
          %1568 = vmatmul.mubr.f32.gmra.mxu0 %v965
          %v1569 = vpop.f32.mrf.mxu0
          %v1570 = vadd.f32 0.0, %v1569
          %v1571 = vpop.f32.mrf.mxu0
          %1572 = vmatprep.mubr.f32.mxu0 0.0
          %1573 = vmatmul.mubr.f32.gmra.mxu0 %v968
          %v1574 = vpop.f32.mrf.mxu0
          %v1575 = vadd.f32 0.0, %v1574
          %v1576 = vpop.f32.mrf.mxu0
          %1577 = vmatprep.mubr.f32.mxu0 0.0
          %1578 = vmatmul.mubr.f32.gmra.mxu0 %v971
          %v1579 = vpop.f32.mrf.mxu0
          %v1580 = vadd.f32 0.0, %v1579
          %v1581 = vpop.f32.mrf.mxu0
          %1582 = vmatprep.mubr.f32.mxu0 0.0
          %1583 = vmatmul.mubr.f32.gmra.mxu0 %v974
          %v1584 = vpop.f32.mrf.mxu0
          %v1585 = vadd.f32 0.0, %v1584
          %v1586 = vpop.f32.mrf.mxu0
          %1587 = vmatprep.mubr.f32.mxu0 0.0
          %1588 = vmatmul.mubr.f32.gmra.mxu0 %v977
          %v1589 = vpop.f32.mrf.mxu0
          %v1590 = vadd.f32 0.0, %v1589
          %v1591 = vpop.f32.mrf.mxu0
          %1592 = vdwg.mxu0
          %1593 = vmatprep.subr.mxu0 0.0
          %1594 = vmatpush1.msra.mxu0 0.0
          %1595 = vmatprep.subr.mxu0 0.0
          %1596 = vmatpush1.msra.mxu0 0.0
          %1597 = vmatprep.subr.mxu0 0.0
          %1598 = vmatpush1.msra.mxu0 0.0
          %1599 = vmatprep.subr.mxu0 0.0
          %1600 = vmatpush1.msra.mxu0 0.0
          %1601 = vmatprep.subr.mxu0 0.0
          %1602 = vmatpush1.msra.mxu0 0.0
          %1603 = vmatprep.subr.mxu0 0.0
          %1604 = vmatpush1.msra.mxu0 0.0
          %1605 = vmatprep.subr.mxu0 0.0
          %1606 = vmatpush1.msra.mxu0 0.0
          %1607 = vmatprep.subr.mxu0 0.0
          %1608 = vmatpush1.msra.mxu0 0.0
          %1609 = vmatprep.subr.mxu0 0.0
          %1610 = vmatpush1.msra.mxu0 0.0
          %1611 = vmatprep.subr.mxu0 0.0
          %1612 = vmatpush1.msra.mxu0 0.0
          %1613 = vmatprep.subr.mxu0 0.0
          %1614 = vmatpush1.msra.mxu0 %v891
          %1615 = vmatprep.subr.mxu0 0.0
          %1616 = vmatpush1.msra.mxu0 %v890
          %1617 = vmatprep.subr.mxu0 0.0
          %1618 = vmatpush1.msra.mxu0 %v889
          %1619 = vmatprep.subr.mxu0 0.0
          %1620 = vmatpush1.msra.mxu0 %v888
          %1621 = vmatprep.subr.mxu0 0.0
          %1622 = vmatpush1.msra.mxu0 %v887
          %1623 = vmatprep.subr.mxu0 0.0
          %1624 = vmatpush1.msra.mxu0 %v886
          %1625 = vmatprep.subr.mxu0 0.0
          %1626 = vmatpush2.msra.mxu0 0.0
          %1627 = vmatprep.subr.mxu0 0.0
          %1628 = vmatpush2.msra.mxu0 0.0
          %1629 = vmatprep.subr.mxu0 0.0
          %1630 = vmatpush2.msra.mxu0 0.0
          %1631 = vmatprep.subr.mxu0 0.0
          %1632 = vmatpush2.msra.mxu0 0.0
          %1633 = vmatprep.subr.mxu0 0.0
          %1634 = vmatpush2.msra.mxu0 0.0
          %1635 = vmatprep.subr.mxu0 0.0
          %1636 = vmatpush2.msra.mxu0 0.0
          %1637 = vmatprep.subr.mxu0 0.0
          %1638 = vmatpush2.msra.mxu0 0.0
          %1639 = vmatprep.subr.mxu0 0.0
          %1640 = vmatpush2.msra.mxu0 0.0
          %1641 = vmatprep.subr.mxu0 0.0
          %1642 = vmatpush2.msra.mxu0 0.0
          %1643 = vmatprep.subr.mxu0 0.0
          %1644 = vmatpush2.msra.mxu0 0.0
          %1645 = vmatprep.subr.mxu0 0.0
          %1646 = vmatpush2.msra.mxu0 0.0
          %1647 = vmatprep.subr.mxu0 0.0
          %1648 = vmatpush2.msra.mxu0 0.0
          %1649 = vmatprep.subr.mxu0 0.0
          %1650 = vmatpush2.msra.mxu0 0.0
          %1651 = vmatprep.subr.mxu0 0.0
          %1652 = vmatpush2.msra.mxu0 0.0
          %1653 = vmatprep.subr.mxu0 0.0
          %1654 = vmatpush2.msra.mxu0 0.0
          %1655 = vmatprep.subr.mxu0 0.0
          %1656 = vmatpush2.msra.mxu0 0.0
          %1657 = vmatprep.mubr.f32.mxu0 0.0
          %1658 = vmatmul.mubr.f32.gmra.mxu0 %v1081
          %v1659 = vpop.f32.mrf.mxu0
          %v1660 = vadd.f32 0.0, %v1659
          %v1661 = vpop.f32.mrf.mxu0
          %1662 = vmatprep.mubr.f32.mxu0 0.0
          %1663 = vmatmul.mubr.f32.gmra.mxu0 %v1084
          %v1664 = vpop.f32.mrf.mxu0
          %v1665 = vadd.f32 0.0, %v1664
          %v1666 = vpop.f32.mrf.mxu0
          %1667 = vmatprep.mubr.f32.mxu0 0.0
          %1668 = vmatmul.mubr.f32.gmra.mxu0 %v1087
          %v1669 = vpop.f32.mrf.mxu0
          %v1670 = vadd.f32 0.0, %v1669
          %v1671 = vpop.f32.mrf.mxu0
          %1672 = vmatprep.mubr.f32.mxu0 0.0
          %1673 = vmatmul.mubr.f32.gmra.mxu0 %v1090
          %v1674 = vpop.f32.mrf.mxu0
          %v1675 = vadd.f32 0.0, %v1674
          %v1676 = vpop.f32.mrf.mxu0
          %1677 = vmatprep.mubr.f32.mxu0 0.0
          %1678 = vmatmul.mubr.f32.gmra.mxu0 %v1093
          %v1679 = vpop.f32.mrf.mxu0
          %v1680 = vadd.f32 0.0, %v1679
          %v1681 = vpop.f32.mrf.mxu0
          %1682 = vmatprep.mubr.f32.mxu0 0.0
          %1683 = vmatmul.mubr.f32.gmra.mxu0 %v1096
          %v1684 = vpop.f32.mrf.mxu0
          %v1685 = vadd.f32 0.0, %v1684
          %v1686 = vpop.f32.mrf.mxu0
          %1687 = vdwg.mxu0
          %v1688 = vsub.f32 %v1470, %v880
          %v1689 = vsub.f32 %v1475, %v881
          %v1690 = vsub.f32 %v1480, %v882
          %v1691 = vsub.f32 %v1485, %v883
          %v1692 = vsub.f32 %v1490, %v884
          %v1693 = vsub.f32 %v1495, %v885
          %v1694 = vsub.f32 %v1375, %v886
          %v1695 = vsub.f32 %v1380, %v887
          %v1696 = vsub.f32 %v1385, %v888
          %v1697 = vsub.f32 %v1390, %v889
          %v1698 = vsub.f32 %v1395, %v890
          %v1699 = vsub.f32 %v1400, %v891
          %v1700 = vsel %vm1289, %v1688, %v1694
          %v1701 = vsel %vm1289, %v1689, %v1695
          %v1702 = vsel %vm1289, %v1690, %v1696
          %v1703 = vsel %vm1289, %v1691, %v1697
          %v1704 = vsel %vm1289, %v1692, %v1698
          %v1705 = vsel %vm1289, %v1693, %v1699
          %v1706 = vsel %vm1289, 0.0006510417, 0.0013020834
          %v1707 = vsub.f32 %v1565, %v1660
          %v1708 = vsub.f32 %v1570, %v1665
          %v1709 = vsub.f32 %v1575, %v1670
          %v1710 = vsub.f32 %v1580, %v1675
          %v1711 = vsub.f32 %v1585, %v1680
          %v1712 = vsub.f32 %v1590, %v1685
          %v1713 = vsub.f32 %v1565, %v910
          %v1714 = vsub.f32 %v1570, %v911
          %v1715 = vsub.f32 %v1575, %v912
          %v1716 = vsub.f32 %v1580, %v913
          %v1717 = vsub.f32 %v1585, %v914
          %v1718 = vsub.f32 %v1590, %v915
          %v1719 = vsub.f32 %v1660, %v910
          %v1720 = vsub.f32 %v1665, %v911
          %v1721 = vsub.f32 %v1670, %v912
          %v1722 = vsub.f32 %v1675, %v913
          %v1723 = vsub.f32 %v1680, %v914
          %v1724 = vsub.f32 %v1685, %v915
          %v1725 = vmul.f32 %v1706, %v1700
          %v1726 = vmul.f32 %v1706, %v1701
          %v1727 = vmul.f32 %v1706, %v1702
          %v1728 = vmul.f32 %v1706, %v1703
          %v1729 = vmul.f32 %v1706, %v1704
          %v1730 = vmul.f32 %v1706, %v1705
          %v1731 = vmul.f32 %v1725, %v1700
          %v1732 = vmul.f32 %v1726, %v1701
          %v1733 = vmul.f32 %v1727, %v1702
          %v1734 = vmul.f32 %v1728, %v1703
          %v1735 = vmul.f32 %v1729, %v1704
          %v1736 = vmul.f32 %v1730, %v1705
          %v1737 = vmul.f32 %v1707, 0.0006510417
          %v1738 = vmul.f32 %v1708, 0.0006510417
          %v1739 = vmul.f32 %v1709, 0.0006510417
          %v1740 = vmul.f32 %v1710, 0.0006510417
          %v1741 = vmul.f32 %v1711, 0.0006510417
          %v1742 = vmul.f32 %v1712, 0.0006510417
          %v1743 = vmul.f32 %v1737, %v1707
          %v1744 = vmul.f32 %v1738, %v1708
          %v1745 = vmul.f32 %v1739, %v1709
          %v1746 = vmul.f32 %v1740, %v1710
          %v1747 = vmul.f32 %v1741, %v1711
          %v1748 = vmul.f32 %v1742, %v1712
          %v1749 = vmul.f32 %v1713, %v1713
          %v1750 = vmul.f32 %v1714, %v1714
          %v1751 = vmul.f32 %v1715, %v1715
          %v1752 = vmul.f32 %v1716, %v1716
          %v1753 = vmul.f32 %v1717, %v1717
          %v1754 = vmul.f32 %v1718, %v1718
          %v1755 = vmul.f32 %v1719, %v1719
          %v1756 = vmul.f32 %v1720, %v1720
          %v1757 = vmul.f32 %v1721, %v1721
          %v1758 = vmul.f32 %v1722, %v1722
          %v1759 = vmul.f32 %v1723, %v1723
          %v1760 = vmul.f32 %v1724, %v1724
          %v1761 = vadd.f32 %v1749, %v1755
          %v1762 = vadd.f32 %v1750, %v1756
          %v1763 = vadd.f32 %v1751, %v1757
          %v1764 = vadd.f32 %v1752, %v1758
          %v1765 = vadd.f32 %v1753, %v1759
          %v1766 = vadd.f32 %v1754, %v1760
          %v1767 = vmul.f32 %v1761, 0.0006510417
          %v1768 = vmul.f32 %v1762, 0.0006510417
          %v1769 = vmul.f32 %v1763, 0.0006510417
          %v1770 = vmul.f32 %v1764, 0.0006510417
          %v1771 = vmul.f32 %v1765, 0.0006510417
          %v1772 = vmul.f32 %v1766, 0.0006510417
          %v1773 = vadd.f32 %v1743, %v1767
          %v1774 = vadd.f32 %v1744, %v1768
          %v1775 = vadd.f32 %v1745, %v1769
          %v1776 = vadd.f32 %v1746, %v1770
          %v1777 = vadd.f32 %v1747, %v1771
          %v1778 = vadd.f32 %v1748, %v1772
          %v1779 = vsel %vm1289, %v1773, 0.0
          %v1780 = vsel %vm1289, %v1774, 0.0
          %v1781 = vsel %vm1289, %v1775, 0.0
          %v1782 = vsel %vm1289, %v1776, 0.0
          %v1783 = vsel %vm1289, %v1777, 0.0
          %v1784 = vsel %vm1289, %v1778, 0.0
          %v1785 = vadd.f32 %v1731, %v1779
          %v1786 = vadd.f32 %v1732, %v1780
          %v1787 = vadd.f32 %v1733, %v1781
          %v1788 = vadd.f32 %v1734, %v1782
          %v1789 = vadd.f32 %v1735, %v1783
          %v1790 = vadd.f32 %v1736, %v1784
          %v1791 = vsel %vm618, %v1283, 0.0
          %v1792 = vsel %vm618, %v1284, 0.0
          %v1793 = vadd.f32 %v1791, %v1792
          %v1794 = vsel %vm618, %v1285, 0.0
          %v1795 = vadd.f32 %v1793, %v1794
          %v1796 = vsel %vm618, %v1286, 0.0
          %v1797 = vadd.f32 %v1795, %v1796
          %v1798 = vsel %vm618, %v1287, 0.0
          %v1799 = vadd.f32 %v1797, %v1798
          %v1800 = vsel %vm618, %v1288, 0.0
          %v1801 = vadd.f32 %v1799, %v1800
          %1802 = vadd.xlane.f32.xlu0 %v1801
          %v1803 = vpop.xlane.xlu0 %1802
          %v1804 = vrot.slane %v1803, 4
          %v1805 = vadd.f32 %v1803, %v1804
          %v1806 = vrot.slane %v1805, 2
          %v1807 = vadd.f32 %v1805, %v1806
          %v1808 = vrot.slane %v1807, 1
          %v1809 = vadd.f32 %v1807, %v1808
          %s1810 = vtos %v1809
          %v1811 = vsel %vm618, %v1785, 0.0
          %v1812 = vsel %vm618, %v1786, 0.0
          %v1813 = vadd.f32 %v1811, %v1812
          %v1814 = vsel %vm618, %v1787, 0.0
          %v1815 = vadd.f32 %v1813, %v1814
          %v1816 = vsel %vm618, %v1788, 0.0
          %v1817 = vadd.f32 %v1815, %v1816
          %v1818 = vsel %vm618, %v1789, 0.0
          %v1819 = vadd.f32 %v1817, %v1818
          %v1820 = vsel %vm618, %v1790, 0.0
          %v1821 = vadd.f32 %v1819, %v1820
          %1822 = vadd.xlane.f32.xlu0 %v1821
          %v1823 = vpop.xlane.xlu0 %1822
          %v1824 = vrot.slane %v1823, 4
          %v1825 = vadd.f32 %v1823, %v1824
          %v1826 = vrot.slane %v1825, 2
          %v1827 = vadd.f32 %v1825, %v1826
          %v1828 = vrot.slane %v1827, 1
          %v1829 = vadd.f32 %v1827, %v1828
          %s1830 = vtos %v1829
          %s1831 = sadd.f32 %s1810, %s1830
          %s1832 = scalar_lea.smem [#allocation8], 0
          %1833 = sst [smem:[%s1832]] %s1831
        $region52: #{usl_loss.1} parent=39 // pred_fallthru
          _
        // Predicated region
        $region53: #{usl_loss.1} parent=39 // pred_check
          %p1834 = pneg %p164
        $region54: #{usl_loss.1} parent=39 // pred_check_branch
          %1836 = sbr.rel (%p1834) target = $region56
        $region55: #{usl_loss.1} parent=39 // pred_region
          %s1838 = ssub.s32 16, 16
          %1839 = vsyncadd [#allocation9], %s1838
          %1842 = dma.smem_to_hbm [#allocation8], 16, %s5, [#allocation9]
        $region56: #{usl_loss.1} parent=39 // pred_fallthru
          _
        // Predicated region
        $region57: #{usl_loss.1} parent=39 // pred_check
          %p1843 = pneg %p164
        $region58: #{usl_loss.1} parent=39 // pred_check_branch
          %1845 = sbr.rel (%p1843) target = $region60
        $region59: #{usl_loss.1} parent=39 // pred_region
          %1846 = dma.done [#allocation9], 16
        $region60: #{usl_loss.1} parent=39 // pred_fallthru
          _
        %1847 = sfence
      $region40: #{usl_loss.1} parent=5 // pred_fallthru
        _
      %p1848 = scmp.le.s32.totalorder 2, %s12
      // Predicated region
      $region61: #{usl_loss.1} parent=5 // pred_check
        %p1849 = pneg %p1848
      $region62: #{usl_loss.1} parent=5 // pred_check_branch
        %1851 = sbr.rel (%p1849) target = $region64
      $region63: #{usl_loss.1} parent=5 // pred_region
        %s1852 = ssub.s32 %s12, 2
      $region64: #{usl_loss.1} parent=5 // pred_fallthru
        _
    $region6: #{usl_loss.1} parent=1 // loop_footer
      %s16 = sadd.s32 1, %s12
    $region7: #{usl_loss.1} parent=1 // loop_footer_branch
      %11 = sbr.rel target = $region3
    $region8: #{usl_loss.1} parent=1 // loop_exit
      _
    %1853 = vsyncpa [#allocation9], 1
    %s1854 = scalar_lea.sflag [#allocation9], 1
    %1855 = vsyncpa %s1854, 1

</llo_original>
